<compile_context>
chip_gen: v7x
topology: tpu7x:2x2x1
jax: 0.10.0
libtpu: 0.0.40
codegen_flags: <defaults>
</compile_context>

<pallas_src>
import functools

import jax
import jax.numpy as jnp
import numpy as np
from jax.experimental import pallas as pl
from jax.experimental.pallas import tpu as pltpu

EPS = 1e-5


# ---------------------------------------------------------------------------
# Shared in-kernel conv: 7x7 conv of one flattened padded image on the MXU.
# ---------------------------------------------------------------------------
def _conv_image(x_ref, b, w_ref, *, kh, kw, wpad, lout):
    """x_ref[b]: (Cin, Lpad) bf16 flat padded image (row stride wpad = W+6).
    w_ref: (KH, Cout, KW*Cin) bf16.  Returns (Cout, lout) f32 with lane
    q = h*wpad + w'; columns with w' >= W are junk (masked / never read)."""
    cout = w_ref.shape[1]
    acc = jnp.zeros((cout, lout), jnp.float32)
    for i in range(kh):
        # 7 taps of this kernel row: static lane-offset slices (VMEM-local).
        taps = [x_ref[b, :, i * wpad + j: i * wpad + j + lout] for j in range(kw)]
        p = jnp.concatenate(taps, axis=0)                     # (KW*Cin, lout) bf16
        acc = acc + jnp.dot(w_ref[i], p, preferred_element_type=jnp.float32)
    return acc


# ---------------------------------------------------------------------------
# Pass 1: conv (in-kernel taps) + masked partial BN statistics (no y output).
# ---------------------------------------------------------------------------
def conv_stats_kernel(x_ref, w_ref, mask_ref, stats_ref, *, kh, kw, wpad, lout):
    imb = x_ref.shape[0]
    cout = w_ref.shape[1]
    m = mask_ref[...]                                  # (1, lout), 1.0 on valid cols
    s1 = jnp.zeros((cout, 1), jnp.float32)
    s2 = jnp.zeros((cout, 1), jnp.float32)
    for b in range(imb):
        y = _conv_image(x_ref, b, w_ref, kh=kh, kw=kw, wpad=wpad, lout=lout)
        ym = y * m
        s1 = s1 + jnp.sum(ym, axis=1, keepdims=True)
        s2 = s2 + jnp.sum(ym * ym, axis=1, keepdims=True)
    stats_ref[...] = jnp.concatenate([s1, s2], axis=1)[None]   # (1, Cout, 2)


# ---------------------------------------------------------------------------
# Pass 2: recompute conv, fused BatchNorm (pre-folded scale/bias) + ReLU +
# AvgPool(4,4).  Row pooling = shifted adds; column pooling = tiny matmul.
# ---------------------------------------------------------------------------
def conv_bn_relu_pool_kernel(x_ref, w_ref, scale_ref, bias_ref, pw_ref, out_ref,
                             *, kh, kw, wpad, lout, w_valid, hp_out, pool):
    imb = x_ref.shape[0]
    scale = scale_ref[...]                             # (Cout, 1) f32
    bias = bias_ref[...]                               # (Cout, 1) f32
    pw = pw_ref[...]                                   # (W, Wp) f32, entries 1/(pool*pool)
    lh = lout - (pool - 1) * wpad
    for b in range(imb):
        y = _conv_image(x_ref, b, w_ref, kh=kh, kw=kw, wpad=wpad, lout=lout)
        y = jnp.maximum(y * scale + bias, 0.0)         # fused BN + ReLU (f32)
        # Sum the `pool` rows of every pool group: t[:, q] = sum_a y[:, q + a*wpad].
        t = y[:, 0:lh]
        for a in range(1, pool):
            t = t + y[:, a * wpad: a * wpad + lh]
        # Per pooled row: take the valid W columns and pool over w via a tiny dot.
        for hp in range(hp_out):
            base = hp * pool * wpad
            row = t[:, base: base + w_valid]                           # (Cout, W)
            out_ref[b, :, hp, :] = jnp.dot(row, pw,
                                           preferred_element_type=jnp.float32)


# ---------------------------------------------------------------------------
# Wrapper helpers
# ---------------------------------------------------------------------------
def _images_per_step(n, lanes_per_image, *, target_lanes=8192, max_images=8):
    """Group images per grid step to reach ~8k lanes of work (amortize the
    per-step pipeline overhead) while keeping >= 2 grid steps when N >= 2 so
    the 'parallel' axis can feed both TensorCores on v7x."""
    imb = max(1, min(n, max_images, target_lanes // max(lanes_per_image, 1)))
    while n % imb:
        imb -= 1
    if n >= 2 and n // imb < 2:
        imb = max(1, n // 2)
        while n % imb:
            imb -= 1
    return imb


def intro_block_forward(x, conv_w, gamma, beta, *, ksize=7, pool=4):
    """x: (N, Cin, H, W) NCHW, conv_w: (Cout, Cin, KH, KW). Returns NCHW output."""
    N, Cin, H, W = x.shape
    Cout, Cin_w, KH, KW = conv_w.shape
    assert Cin_w == Cin and KH == ksize and KW == ksize
    assert H % pool == 0 and W % pool == 0, "H, W must be multiples of pool"
    pad = ksize // 2
    Hp, Wp = H // pool, W // pool
    Wpad = W + KW - 1                    # padded row width (= W + 2*pad)
    Hpad = H + KH - 1
    Lout = H * Wpad                      # conv-output lanes computed per image
    Lpad = Hpad * Wpad + (KW - 1)        # flat padded image + tail zeros (tap-slice bounds)

    # ---- prep: pad + flatten x (no im2col amplification), repack weights ----
    xp = jnp.pad(x.astype(jnp.bfloat16),
                 ((0, 0), (0, 0), (pad, pad), (pad, pad)))     # (N, Cin, H+6, W+6)
    xf = xp.reshape(N, Cin, Hpad * Wpad)
    xf = jnp.pad(xf, ((0, 0), (0, 0), (0, KW - 1)))            # (N, Cin, Lpad) bf16

    # w_r[i, co, j*Cin + ci] = conv_w[co, ci, i, j]  (matches in-kernel tap order)
    w_r = jnp.transpose(conv_w, (2, 0, 3, 1)).reshape(KH, Cout, KW * Cin)
    w_r = w_r.astype(jnp.bfloat16)

    # Valid-column mask (w' < W) so the padded-width junk never enters BN stats.
    mask = ((jnp.arange(Lout) % Wpad) < W).astype(jnp.float32).reshape(1, Lout)

    # Width-direction average-pooling matrix (also applies the 1/(pool*pool) mean).
    pw_np = np.zeros((W, Wp), np.float32)
    pw_np[np.arange(W), np.arange(W) // pool] = 1.0 / (pool * pool)
    pw = jnp.asarray(pw_np)

    imb = _images_per_step(N, Lout)
    grid = (N // imb,)

    # ---- pass 1: conv + masked partial BN statistics (stats-only) ----------
    stats = pl.pallas_call(
        functools.partial(conv_stats_kernel, kh=KH, kw=KW, wpad=Wpad, lout=Lout),
        grid=grid,
        in_specs=[
            pl.BlockSpec((imb, Cin, Lpad), lambda g: (g, 0, 0)),
            pl.BlockSpec((KH, Cout, KW * Cin), lambda g: (0, 0, 0)),
            pl.BlockSpec((1, Lout), lambda g: (0, 0)),
        ],
        out_specs=pl.BlockSpec((1, Cout, 2), lambda g: (g, 0, 0)),
        out_shape=jax.ShapeDtypeStruct((grid[0], Cout, 2), jnp.float32),
        compiler_params=pltpu.CompilerParams(dimension_semantics=("parallel",)),
    )(xf, w_r, mask)

    # ---- tiny JAX glue: reduce partials, fold BN affine into scale/bias ----
    count = N * H * W
    s1 = jnp.sum(stats[:, :, 0], axis=0)
    s2 = jnp.sum(stats[:, :, 1], axis=0)
    mean = s1 / count
    # Clamp: guards f32 cancellation in E[y^2] - E[y]^2 for large N*H*W.
    var = jnp.maximum(s2 / count - mean * mean, 0.0)
    inv_std = jax.lax.rsqrt(var + EPS)
    g32 = gamma.astype(jnp.float32)
    scale = (g32 * inv_std).reshape(Cout, 1)
    bias = (beta.astype(jnp.float32) - mean * g32 * inv_std).reshape(Cout, 1)

    # ---- pass 2: recompute conv, fused BN + ReLU + AvgPool(4,4) ------------
    out = pl.pallas_call(
        functools.partial(conv_bn_relu_pool_kernel, kh=KH, kw=KW, wpad=Wpad,
                          lout=Lout, w_valid=W, hp_out=Hp, pool=pool),
        grid=grid,
        in_specs=[
            pl.BlockSpec((imb, Cin, Lpad), lambda g: (g, 0, 0)),
            pl.BlockSpec((KH, Cout, KW * Cin), lambda g: (0, 0, 0)),
            pl.BlockSpec((Cout, 1), lambda g: (0, 0)),
            pl.BlockSpec((Cout, 1), lambda g: (0, 0)),
            pl.BlockSpec((W, Wp), lambda g: (0, 0)),
        ],
        out_specs=pl.BlockSpec((imb, Cout, Hp, Wp), lambda g: (g, 0, 0, 0)),
        out_shape=jax.ShapeDtypeStruct((N, Cout, Hp, Wp), jnp.float32),
        compiler_params=pltpu.CompilerParams(dimension_semantics=("parallel",)),
    )(xf, w_r, scale, bias, pw)

    return out                                          # already NCHW


# ---------------------------------------------------------------------------
# Pure-JAX reference of IntroBlock.forward (norm_type='batch', training mode)
# ---------------------------------------------------------------------------
def reference_forward(x, conv_w, gamma, beta, *, ksize=7, pool=4):
    pad = ksize // 2
    y = jax.lax.conv_general_dilated(
        x, conv_w, window_strides=(1, 1), padding=[(pad, pad), (pad, pad)],
        dimension_numbers=("NCHW", "OIHW", "NCHW"),
        precision=jax.lax.Precision.HIGHEST)
    mean = y.mean(axis=(0, 2, 3), keepdims=True)
    var = ((y - mean) ** 2).mean(axis=(0, 2, 3), keepdims=True)
    y = (y - mean) / jnp.sqrt(var + EPS)
    y = y * gamma.reshape(1, -1, 1, 1) + beta.reshape(1, -1, 1, 1)
    y = jnp.maximum(y, 0.0)
    N, C, H, W = y.shape
    return y.reshape(N, C, H // pool, pool, W // pool, pool).mean(axis=(3, 5))


if __name__ == "__main__":
    key = jax.random.PRNGKey(0)
    k_x, k_w, k_g, k_b = jax.random.split(key, 4)

    # Small shapes consistent with the module: RGB input, planes=8.
    N, Cin, H, W = 2, 3, 16, 16
    planes, ksize, pool = 8, 7, 4

    x = jax.random.normal(k_x, (N, Cin, H, W), jnp.float32)

    # Kaiming-uniform-like conv weight (Conv2d shape, no bias).
    fan_in = Cin * ksize * ksize
    bound = 1.0 / np.sqrt(fan_in)
    conv_w = jax.random.uniform(k_w, (planes, Cin, ksize, ksize), jnp.float32,
                                -bound, bound)
    # Non-trivial BN affine params to exercise the scale/bias path.
    gamma = 1.0 + 0.1 * jax.random.normal(k_g, (planes,), jnp.float32)
    beta = 0.1 * jax.random.normal(k_b, (planes,), jnp.float32)

    out = jax.block_until_ready(
        intro_block_forward(x, conv_w, gamma, beta, ksize=ksize, pool=pool))
    assert out.shape == (N, planes, H // pool, W // pool)

    ref = reference_forward(x, conv_w, gamma, beta, ksize=ksize, pool=pool)
    # bf16 matmul operands -> bf16-level tolerance; BN statistics/math are f32.
    np.testing.assert_allclose(np.asarray(out), np.asarray(ref),
                               atol=2e-2, rtol=2e-2)
    print("KERNEL_OK")
</pallas_src>

<mosaic_0001>
module attributes {stable_mosaic.version = 11 : i64} {
  func.func @conv_stats_kernel(%arg0: i32, %arg1: memref<1x3x490xbf16, #tpu.memory_space<vmem>>, %arg2: memref<7x8x21xbf16, #tpu.memory_space<vmem>>, %arg3: memref<1x352xf32, #tpu.memory_space<vmem>>, %arg4: memref<1x8x2xf32, #tpu.memory_space<vmem>>) attributes {dimension_semantics = [#tpu.dimension_semantics<parallel>], iteration_bounds = array<i64: 2>, scalar_prefetch = 0 : i64, scratch_operands = 0 : i64, tpu.core_type = #tpu.core_type<tc>, window_params = [{transform_indices = @transform_0, window_bounds = array<i64: 1, 3, 490>}, {pipeline_mode = #tpu.pipeline_mode<synchronous>, transform_indices = @transform_1, window_bounds = array<i64: 7, 8, 21>}, {pipeline_mode = #tpu.pipeline_mode<synchronous>, transform_indices = @transform_2, window_bounds = array<i64: 1, 352>}, {transform_indices = @transform_3, window_bounds = array<i64: 1, 8, 2>}]} {
    %c0 = arith.constant 0 : index
    %c0_0 = arith.constant 0 : index
    %0 = vector.load %arg3[%c0, %c0_0] : memref<1x352xf32, #tpu.memory_space<vmem>>, vector<1x352xf32>
    %cst = arith.constant 0.000000e+00 : f32
    %1 = vector.broadcast %cst : f32 to vector<8x1xf32>
    %cst_1 = arith.constant 0.000000e+00 : f32
    %2 = vector.broadcast %cst_1 : f32 to vector<8x1xf32>
    %cst_2 = arith.constant 0.000000e+00 : f32
    %3 = vector.broadcast %cst_2 : f32 to vector<8x352xf32>
    %c0_3 = arith.constant 0 : index
    %c0_4 = arith.constant 0 : index
    %c0_5 = arith.constant 0 : index
    %4 = vector.load %arg1[%c0_3, %c0_4, %c0_5] : memref<1x3x490xbf16, #tpu.memory_space<vmem>>, vector<1x3x352xbf16>
    %5 = vector.shape_cast %4 : vector<1x3x352xbf16> to vector<3x352xbf16>
    %c0_6 = arith.constant 0 : index
    %c0_7 = arith.constant 0 : index
    %c1 = arith.constant 1 : index
    %6 = vector.load %arg1[%c0_6, %c0_7, %c1] : memref<1x3x490xbf16, #tpu.memory_space<vmem>>, vector<1x3x352xbf16>
    %7 = vector.shape_cast %6 : vector<1x3x352xbf16> to vector<3x352xbf16>
    %c0_8 = arith.constant 0 : index
    %c0_9 = arith.constant 0 : index
    %c2 = arith.constant 2 : index
    %8 = vector.load %arg1[%c0_8, %c0_9, %c2] : memref<1x3x490xbf16, #tpu.memory_space<vmem>>, vector<1x3x352xbf16>
    %9 = vector.shape_cast %8 : vector<1x3x352xbf16> to vector<3x352xbf16>
    %c0_10 = arith.constant 0 : index
    %c0_11 = arith.constant 0 : index
    %c3 = arith.constant 3 : index
    %10 = vector.load %arg1[%c0_10, %c0_11, %c3] : memref<1x3x490xbf16, #tpu.memory_space<vmem>>, vector<1x3x352xbf16>
    %11 = vector.shape_cast %10 : vector<1x3x352xbf16> to vector<3x352xbf16>
    %c0_12 = arith.constant 0 : index
    %c0_13 = arith.constant 0 : index
    %c4 = arith.constant 4 : index
    %12 = vector.load %arg1[%c0_12, %c0_13, %c4] : memref<1x3x490xbf16, #tpu.memory_space<vmem>>, vector<1x3x352xbf16>
    %13 = vector.shape_cast %12 : vector<1x3x352xbf16> to vector<3x352xbf16>
    %c0_14 = arith.constant 0 : index
    %c0_15 = arith.constant 0 : index
    %c5 = arith.constant 5 : index
    %14 = vector.load %arg1[%c0_14, %c0_15, %c5] : memref<1x3x490xbf16, #tpu.memory_space<vmem>>, vector<1x3x352xbf16>
    %15 = vector.shape_cast %14 : vector<1x3x352xbf16> to vector<3x352xbf16>
    %c0_16 = arith.constant 0 : index
    %c0_17 = arith.constant 0 : index
    %c6 = arith.constant 6 : index
    %16 = vector.load %arg1[%c0_16, %c0_17, %c6] : memref<1x3x490xbf16, #tpu.memory_space<vmem>>, vector<1x3x352xbf16>
    %17 = vector.shape_cast %16 : vector<1x3x352xbf16> to vector<3x352xbf16>
    %18 = tpu.concatenate %5, %7, %9, %11, %13, %15, %17 in 0 : vector<3x352xbf16>, vector<3x352xbf16>, vector<3x352xbf16>, vector<3x352xbf16>, vector<3x352xbf16>, vector<3x352xbf16>, vector<3x352xbf16> -> vector<21x352xbf16>
    %c0_18 = arith.constant 0 : index
    %c0_19 = arith.constant 0 : index
    %c0_20 = arith.constant 0 : index
    %19 = vector.load %arg2[%c0_18, %c0_19, %c0_20] : memref<7x8x21xbf16, #tpu.memory_space<vmem>>, vector<1x8x21xbf16>
    %20 = vector.shape_cast %19 : vector<1x8x21xbf16> to vector<8x21xbf16>
    %cst_21 = arith.constant dense<0.000000e+00> : vector<8x352xf32>
    %21 = tpu.matmul %20, %18, %cst_21 {dimension_numbers = #tpu.dot_dimension_numbers<[1], [0], [0], [1], [0, 0, 1, 1], [], []>} : vector<8x21xbf16>, vector<21x352xbf16>, vector<8x352xf32> -> vector<8x352xf32>
    %22 = arith.addf %3, %21 : vector<8x352xf32>
    %c0_22 = arith.constant 0 : index
    %c0_23 = arith.constant 0 : index
    %c22 = arith.constant 22 : index
    %23 = vector.load %arg1[%c0_22, %c0_23, %c22] : memref<1x3x490xbf16, #tpu.memory_space<vmem>>, vector<1x3x352xbf16>
    %24 = vector.shape_cast %23 : vector<1x3x352xbf16> to vector<3x352xbf16>
    %c0_24 = arith.constant 0 : index
    %c0_25 = arith.constant 0 : index
    %c23 = arith.constant 23 : index
    %25 = vector.load %arg1[%c0_24, %c0_25, %c23] : memref<1x3x490xbf16, #tpu.memory_space<vmem>>, vector<1x3x352xbf16>
    %26 = vector.shape_cast %25 : vector<1x3x352xbf16> to vector<3x352xbf16>
    %c0_26 = arith.constant 0 : index
    %c0_27 = arith.constant 0 : index
    %c24 = arith.constant 24 : index
    %27 = vector.load %arg1[%c0_26, %c0_27, %c24] : memref<1x3x490xbf16, #tpu.memory_space<vmem>>, vector<1x3x352xbf16>
    %28 = vector.shape_cast %27 : vector<1x3x352xbf16> to vector<3x352xbf16>
    %c0_28 = arith.constant 0 : index
    %c0_29 = arith.constant 0 : index
    %c25 = arith.constant 25 : index
    %29 = vector.load %arg1[%c0_28, %c0_29, %c25] : memref<1x3x490xbf16, #tpu.memory_space<vmem>>, vector<1x3x352xbf16>
    %30 = vector.shape_cast %29 : vector<1x3x352xbf16> to vector<3x352xbf16>
    %c0_30 = arith.constant 0 : index
    %c0_31 = arith.constant 0 : index
    %c26 = arith.constant 26 : index
    %31 = vector.load %arg1[%c0_30, %c0_31, %c26] : memref<1x3x490xbf16, #tpu.memory_space<vmem>>, vector<1x3x352xbf16>
    %32 = vector.shape_cast %31 : vector<1x3x352xbf16> to vector<3x352xbf16>
    %c0_32 = arith.constant 0 : index
    %c0_33 = arith.constant 0 : index
    %c27 = arith.constant 27 : index
    %33 = vector.load %arg1[%c0_32, %c0_33, %c27] : memref<1x3x490xbf16, #tpu.memory_space<vmem>>, vector<1x3x352xbf16>
    %34 = vector.shape_cast %33 : vector<1x3x352xbf16> to vector<3x352xbf16>
    %c0_34 = arith.constant 0 : index
    %c0_35 = arith.constant 0 : index
    %c28 = arith.constant 28 : index
    %35 = vector.load %arg1[%c0_34, %c0_35, %c28] : memref<1x3x490xbf16, #tpu.memory_space<vmem>>, vector<1x3x352xbf16>
    %36 = vector.shape_cast %35 : vector<1x3x352xbf16> to vector<3x352xbf16>
    %37 = tpu.concatenate %24, %26, %28, %30, %32, %34, %36 in 0 : vector<3x352xbf16>, vector<3x352xbf16>, vector<3x352xbf16>, vector<3x352xbf16>, vector<3x352xbf16>, vector<3x352xbf16>, vector<3x352xbf16> -> vector<21x352xbf16>
    %c1_36 = arith.constant 1 : index
    %c0_37 = arith.constant 0 : index
    %c0_38 = arith.constant 0 : index
    %38 = vector.load %arg2[%c1_36, %c0_37, %c0_38] : memref<7x8x21xbf16, #tpu.memory_space<vmem>>, vector<1x8x21xbf16>
    %39 = vector.shape_cast %38 : vector<1x8x21xbf16> to vector<8x21xbf16>
    %cst_39 = arith.constant dense<0.000000e+00> : vector<8x352xf32>
    %40 = tpu.matmul %39, %37, %cst_39 {dimension_numbers = #tpu.dot_dimension_numbers<[1], [0], [0], [1], [0, 0, 1, 1], [], []>} : vector<8x21xbf16>, vector<21x352xbf16>, vector<8x352xf32> -> vector<8x352xf32>
    %41 = arith.addf %22, %40 : vector<8x352xf32>
    %c0_40 = arith.constant 0 : index
    %c0_41 = arith.constant 0 : index
    %c44 = arith.constant 44 : index
    %42 = vector.load %arg1[%c0_40, %c0_41, %c44] : memref<1x3x490xbf16, #tpu.memory_space<vmem>>, vector<1x3x352xbf16>
    %43 = vector.shape_cast %42 : vector<1x3x352xbf16> to vector<3x352xbf16>
    %c0_42 = arith.constant 0 : index
    %c0_43 = arith.constant 0 : index
    %c45 = arith.constant 45 : index
    %44 = vector.load %arg1[%c0_42, %c0_43, %c45] : memref<1x3x490xbf16, #tpu.memory_space<vmem>>, vector<1x3x352xbf16>
    %45 = vector.shape_cast %44 : vector<1x3x352xbf16> to vector<3x352xbf16>
    %c0_44 = arith.constant 0 : index
    %c0_45 = arith.constant 0 : index
    %c46 = arith.constant 46 : index
    %46 = vector.load %arg1[%c0_44, %c0_45, %c46] : memref<1x3x490xbf16, #tpu.memory_space<vmem>>, vector<1x3x352xbf16>
    %47 = vector.shape_cast %46 : vector<1x3x352xbf16> to vector<3x352xbf16>
    %c0_46 = arith.constant 0 : index
    %c0_47 = arith.constant 0 : index
    %c47 = arith.constant 47 : index
    %48 = vector.load %arg1[%c0_46, %c0_47, %c47] : memref<1x3x490xbf16, #tpu.memory_space<vmem>>, vector<1x3x352xbf16>
    %49 = vector.shape_cast %48 : vector<1x3x352xbf16> to vector<3x352xbf16>
    %c0_48 = arith.constant 0 : index
    %c0_49 = arith.constant 0 : index
    %c48 = arith.constant 48 : index
    %50 = vector.load %arg1[%c0_48, %c0_49, %c48] : memref<1x3x490xbf16, #tpu.memory_space<vmem>>, vector<1x3x352xbf16>
    %51 = vector.shape_cast %50 : vector<1x3x352xbf16> to vector<3x352xbf16>
    %c0_50 = arith.constant 0 : index
    %c0_51 = arith.constant 0 : index
    %c49 = arith.constant 49 : index
    %52 = vector.load %arg1[%c0_50, %c0_51, %c49] : memref<1x3x490xbf16, #tpu.memory_space<vmem>>, vector<1x3x352xbf16>
    %53 = vector.shape_cast %52 : vector<1x3x352xbf16> to vector<3x352xbf16>
    %c0_52 = arith.constant 0 : index
    %c0_53 = arith.constant 0 : index
    %c50 = arith.constant 50 : index
    %54 = vector.load %arg1[%c0_52, %c0_53, %c50] : memref<1x3x490xbf16, #tpu.memory_space<vmem>>, vector<1x3x352xbf16>
    %55 = vector.shape_cast %54 : vector<1x3x352xbf16> to vector<3x352xbf16>
    %56 = tpu.concatenate %43, %45, %47, %49, %51, %53, %55 in 0 : vector<3x352xbf16>, vector<3x352xbf16>, vector<3x352xbf16>, vector<3x352xbf16>, vector<3x352xbf16>, vector<3x352xbf16>, vector<3x352xbf16> -> vector<21x352xbf16>
    %c2_54 = arith.constant 2 : index
    %c0_55 = arith.constant 0 : index
    %c0_56 = arith.constant 0 : index
    %57 = vector.load %arg2[%c2_54, %c0_55, %c0_56] : memref<7x8x21xbf16, #tpu.memory_space<vmem>>, vector<1x8x21xbf16>
    %58 = vector.shape_cast %57 : vector<1x8x21xbf16> to vector<8x21xbf16>
    %cst_57 = arith.constant dense<0.000000e+00> : vector<8x352xf32>
    %59 = tpu.matmul %58, %56, %cst_57 {dimension_numbers = #tpu.dot_dimension_numbers<[1], [0], [0], [1], [0, 0, 1, 1], [], []>} : vector<8x21xbf16>, vector<21x352xbf16>, vector<8x352xf32> -> vector<8x352xf32>
    %60 = arith.addf %41, %59 : vector<8x352xf32>
    %c0_58 = arith.constant 0 : index
    %c0_59 = arith.constant 0 : index
    %c66 = arith.constant 66 : index
    %61 = vector.load %arg1[%c0_58, %c0_59, %c66] : memref<1x3x490xbf16, #tpu.memory_space<vmem>>, vector<1x3x352xbf16>
    %62 = vector.shape_cast %61 : vector<1x3x352xbf16> to vector<3x352xbf16>
    %c0_60 = arith.constant 0 : index
    %c0_61 = arith.constant 0 : index
    %c67 = arith.constant 67 : index
    %63 = vector.load %arg1[%c0_60, %c0_61, %c67] : memref<1x3x490xbf16, #tpu.memory_space<vmem>>, vector<1x3x352xbf16>
    %64 = vector.shape_cast %63 : vector<1x3x352xbf16> to vector<3x352xbf16>
    %c0_62 = arith.constant 0 : index
    %c0_63 = arith.constant 0 : index
    %c68 = arith.constant 68 : index
    %65 = vector.load %arg1[%c0_62, %c0_63, %c68] : memref<1x3x490xbf16, #tpu.memory_space<vmem>>, vector<1x3x352xbf16>
    %66 = vector.shape_cast %65 : vector<1x3x352xbf16> to vector<3x352xbf16>
    %c0_64 = arith.constant 0 : index
    %c0_65 = arith.constant 0 : index
    %c69 = arith.constant 69 : index
    %67 = vector.load %arg1[%c0_64, %c0_65, %c69] : memref<1x3x490xbf16, #tpu.memory_space<vmem>>, vector<1x3x352xbf16>
    %68 = vector.shape_cast %67 : vector<1x3x352xbf16> to vector<3x352xbf16>
    %c0_66 = arith.constant 0 : index
    %c0_67 = arith.constant 0 : index
    %c70 = arith.constant 70 : index
    %69 = vector.load %arg1[%c0_66, %c0_67, %c70] : memref<1x3x490xbf16, #tpu.memory_space<vmem>>, vector<1x3x352xbf16>
    %70 = vector.shape_cast %69 : vector<1x3x352xbf16> to vector<3x352xbf16>
    %c0_68 = arith.constant 0 : index
    %c0_69 = arith.constant 0 : index
    %c71 = arith.constant 71 : index
    %71 = vector.load %arg1[%c0_68, %c0_69, %c71] : memref<1x3x490xbf16, #tpu.memory_space<vmem>>, vector<1x3x352xbf16>
    %72 = vector.shape_cast %71 : vector<1x3x352xbf16> to vector<3x352xbf16>
    %c0_70 = arith.constant 0 : index
    %c0_71 = arith.constant 0 : index
    %c72 = arith.constant 72 : index
    %73 = vector.load %arg1[%c0_70, %c0_71, %c72] : memref<1x3x490xbf16, #tpu.memory_space<vmem>>, vector<1x3x352xbf16>
    %74 = vector.shape_cast %73 : vector<1x3x352xbf16> to vector<3x352xbf16>
    %75 = tpu.concatenate %62, %64, %66, %68, %70, %72, %74 in 0 : vector<3x352xbf16>, vector<3x352xbf16>, vector<3x352xbf16>, vector<3x352xbf16>, vector<3x352xbf16>, vector<3x352xbf16>, vector<3x352xbf16> -> vector<21x352xbf16>
    %c3_72 = arith.constant 3 : index
    %c0_73 = arith.constant 0 : index
    %c0_74 = arith.constant 0 : index
    %76 = vector.load %arg2[%c3_72, %c0_73, %c0_74] : memref<7x8x21xbf16, #tpu.memory_space<vmem>>, vector<1x8x21xbf16>
    %77 = vector.shape_cast %76 : vector<1x8x21xbf16> to vector<8x21xbf16>
    %cst_75 = arith.constant dense<0.000000e+00> : vector<8x352xf32>
    %78 = tpu.matmul %77, %75, %cst_75 {dimension_numbers = #tpu.dot_dimension_numbers<[1], [0], [0], [1], [0, 0, 1, 1], [], []>} : vector<8x21xbf16>, vector<21x352xbf16>, vector<8x352xf32> -> vector<8x352xf32>
    %79 = arith.addf %60, %78 : vector<8x352xf32>
    %c0_76 = arith.constant 0 : index
    %c0_77 = arith.constant 0 : index
    %c88 = arith.constant 88 : index
    %80 = vector.load %arg1[%c0_76, %c0_77, %c88] : memref<1x3x490xbf16, #tpu.memory_space<vmem>>, vector<1x3x352xbf16>
    %81 = vector.shape_cast %80 : vector<1x3x352xbf16> to vector<3x352xbf16>
    %c0_78 = arith.constant 0 : index
    %c0_79 = arith.constant 0 : index
    %c89 = arith.constant 89 : index
    %82 = vector.load %arg1[%c0_78, %c0_79, %c89] : memref<1x3x490xbf16, #tpu.memory_space<vmem>>, vector<1x3x352xbf16>
    %83 = vector.shape_cast %82 : vector<1x3x352xbf16> to vector<3x352xbf16>
    %c0_80 = arith.constant 0 : index
    %c0_81 = arith.constant 0 : index
    %c90 = arith.constant 90 : index
    %84 = vector.load %arg1[%c0_80, %c0_81, %c90] : memref<1x3x490xbf16, #tpu.memory_space<vmem>>, vector<1x3x352xbf16>
    %85 = vector.shape_cast %84 : vector<1x3x352xbf16> to vector<3x352xbf16>
    %c0_82 = arith.constant 0 : index
    %c0_83 = arith.constant 0 : index
    %c91 = arith.constant 91 : index
    %86 = vector.load %arg1[%c0_82, %c0_83, %c91] : memref<1x3x490xbf16, #tpu.memory_space<vmem>>, vector<1x3x352xbf16>
    %87 = vector.shape_cast %86 : vector<1x3x352xbf16> to vector<3x352xbf16>
    %c0_84 = arith.constant 0 : index
    %c0_85 = arith.constant 0 : index
    %c92 = arith.constant 92 : index
    %88 = vector.load %arg1[%c0_84, %c0_85, %c92] : memref<1x3x490xbf16, #tpu.memory_space<vmem>>, vector<1x3x352xbf16>
    %89 = vector.shape_cast %88 : vector<1x3x352xbf16> to vector<3x352xbf16>
    %c0_86 = arith.constant 0 : index
    %c0_87 = arith.constant 0 : index
    %c93 = arith.constant 93 : index
    %90 = vector.load %arg1[%c0_86, %c0_87, %c93] : memref<1x3x490xbf16, #tpu.memory_space<vmem>>, vector<1x3x352xbf16>
    %91 = vector.shape_cast %90 : vector<1x3x352xbf16> to vector<3x352xbf16>
    %c0_88 = arith.constant 0 : index
    %c0_89 = arith.constant 0 : index
    %c94 = arith.constant 94 : index
    %92 = vector.load %arg1[%c0_88, %c0_89, %c94] : memref<1x3x490xbf16, #tpu.memory_space<vmem>>, vector<1x3x352xbf16>
    %93 = vector.shape_cast %92 : vector<1x3x352xbf16> to vector<3x352xbf16>
    %94 = tpu.concatenate %81, %83, %85, %87, %89, %91, %93 in 0 : vector<3x352xbf16>, vector<3x352xbf16>, vector<3x352xbf16>, vector<3x352xbf16>, vector<3x352xbf16>, vector<3x352xbf16>, vector<3x352xbf16> -> vector<21x352xbf16>
    %c4_90 = arith.constant 4 : index
    %c0_91 = arith.constant 0 : index
    %c0_92 = arith.constant 0 : index
    %95 = vector.load %arg2[%c4_90, %c0_91, %c0_92] : memref<7x8x21xbf16, #tpu.memory_space<vmem>>, vector<1x8x21xbf16>
    %96 = vector.shape_cast %95 : vector<1x8x21xbf16> to vector<8x21xbf16>
    %cst_93 = arith.constant dense<0.000000e+00> : vector<8x352xf32>
    %97 = tpu.matmul %96, %94, %cst_93 {dimension_numbers = #tpu.dot_dimension_numbers<[1], [0], [0], [1], [0, 0, 1, 1], [], []>} : vector<8x21xbf16>, vector<21x352xbf16>, vector<8x352xf32> -> vector<8x352xf32>
    %98 = arith.addf %79, %97 : vector<8x352xf32>
    %c0_94 = arith.constant 0 : index
    %c0_95 = arith.constant 0 : index
    %c110 = arith.constant 110 : index
    %99 = vector.load %arg1[%c0_94, %c0_95, %c110] : memref<1x3x490xbf16, #tpu.memory_space<vmem>>, vector<1x3x352xbf16>
    %100 = vector.shape_cast %99 : vector<1x3x352xbf16> to vector<3x352xbf16>
    %c0_96 = arith.constant 0 : index
    %c0_97 = arith.constant 0 : index
    %c111 = arith.constant 111 : index
    %101 = vector.load %arg1[%c0_96, %c0_97, %c111] : memref<1x3x490xbf16, #tpu.memory_space<vmem>>, vector<1x3x352xbf16>
    %102 = vector.shape_cast %101 : vector<1x3x352xbf16> to vector<3x352xbf16>
    %c0_98 = arith.constant 0 : index
    %c0_99 = arith.constant 0 : index
    %c112 = arith.constant 112 : index
    %103 = vector.load %arg1[%c0_98, %c0_99, %c112] : memref<1x3x490xbf16, #tpu.memory_space<vmem>>, vector<1x3x352xbf16>
    %104 = vector.shape_cast %103 : vector<1x3x352xbf16> to vector<3x352xbf16>
    %c0_100 = arith.constant 0 : index
    %c0_101 = arith.constant 0 : index
    %c113 = arith.constant 113 : index
    %105 = vector.load %arg1[%c0_100, %c0_101, %c113] : memref<1x3x490xbf16, #tpu.memory_space<vmem>>, vector<1x3x352xbf16>
    %106 = vector.shape_cast %105 : vector<1x3x352xbf16> to vector<3x352xbf16>
    %c0_102 = arith.constant 0 : index
    %c0_103 = arith.constant 0 : index
    %c114 = arith.constant 114 : index
    %107 = vector.load %arg1[%c0_102, %c0_103, %c114] : memref<1x3x490xbf16, #tpu.memory_space<vmem>>, vector<1x3x352xbf16>
    %108 = vector.shape_cast %107 : vector<1x3x352xbf16> to vector<3x352xbf16>
    %c0_104 = arith.constant 0 : index
    %c0_105 = arith.constant 0 : index
    %c115 = arith.constant 115 : index
    %109 = vector.load %arg1[%c0_104, %c0_105, %c115] : memref<1x3x490xbf16, #tpu.memory_space<vmem>>, vector<1x3x352xbf16>
    %110 = vector.shape_cast %109 : vector<1x3x352xbf16> to vector<3x352xbf16>
    %c0_106 = arith.constant 0 : index
    %c0_107 = arith.constant 0 : index
    %c116 = arith.constant 116 : index
    %111 = vector.load %arg1[%c0_106, %c0_107, %c116] : memref<1x3x490xbf16, #tpu.memory_space<vmem>>, vector<1x3x352xbf16>
    %112 = vector.shape_cast %111 : vector<1x3x352xbf16> to vector<3x352xbf16>
    %113 = tpu.concatenate %100, %102, %104, %106, %108, %110, %112 in 0 : vector<3x352xbf16>, vector<3x352xbf16>, vector<3x352xbf16>, vector<3x352xbf16>, vector<3x352xbf16>, vector<3x352xbf16>, vector<3x352xbf16> -> vector<21x352xbf16>
    %c5_108 = arith.constant 5 : index
    %c0_109 = arith.constant 0 : index
    %c0_110 = arith.constant 0 : index
    %114 = vector.load %arg2[%c5_108, %c0_109, %c0_110] : memref<7x8x21xbf16, #tpu.memory_space<vmem>>, vector<1x8x21xbf16>
    %115 = vector.shape_cast %114 : vector<1x8x21xbf16> to vector<8x21xbf16>
    %cst_111 = arith.constant dense<0.000000e+00> : vector<8x352xf32>
    %116 = tpu.matmul %115, %113, %cst_111 {dimension_numbers = #tpu.dot_dimension_numbers<[1], [0], [0], [1], [0, 0, 1, 1], [], []>} : vector<8x21xbf16>, vector<21x352xbf16>, vector<8x352xf32> -> vector<8x352xf32>
    %117 = arith.addf %98, %116 : vector<8x352xf32>
    %c0_112 = arith.constant 0 : index
    %c0_113 = arith.constant 0 : index
    %c132 = arith.constant 132 : index
    %118 = vector.load %arg1[%c0_112, %c0_113, %c132] : memref<1x3x490xbf16, #tpu.memory_space<vmem>>, vector<1x3x352xbf16>
    %119 = vector.shape_cast %118 : vector<1x3x352xbf16> to vector<3x352xbf16>
    %c0_114 = arith.constant 0 : index
    %c0_115 = arith.constant 0 : index
    %c133 = arith.constant 133 : index
    %120 = vector.load %arg1[%c0_114, %c0_115, %c133] : memref<1x3x490xbf16, #tpu.memory_space<vmem>>, vector<1x3x352xbf16>
    %121 = vector.shape_cast %120 : vector<1x3x352xbf16> to vector<3x352xbf16>
    %c0_116 = arith.constant 0 : index
    %c0_117 = arith.constant 0 : index
    %c134 = arith.constant 134 : index
    %122 = vector.load %arg1[%c0_116, %c0_117, %c134] : memref<1x3x490xbf16, #tpu.memory_space<vmem>>, vector<1x3x352xbf16>
    %123 = vector.shape_cast %122 : vector<1x3x352xbf16> to vector<3x352xbf16>
    %c0_118 = arith.constant 0 : index
    %c0_119 = arith.constant 0 : index
    %c135 = arith.constant 135 : index
    %124 = vector.load %arg1[%c0_118, %c0_119, %c135] : memref<1x3x490xbf16, #tpu.memory_space<vmem>>, vector<1x3x352xbf16>
    %125 = vector.shape_cast %124 : vector<1x3x352xbf16> to vector<3x352xbf16>
    %c0_120 = arith.constant 0 : index
    %c0_121 = arith.constant 0 : index
    %c136 = arith.constant 136 : index
    %126 = vector.load %arg1[%c0_120, %c0_121, %c136] : memref<1x3x490xbf16, #tpu.memory_space<vmem>>, vector<1x3x352xbf16>
    %127 = vector.shape_cast %126 : vector<1x3x352xbf16> to vector<3x352xbf16>
    %c0_122 = arith.constant 0 : index
    %c0_123 = arith.constant 0 : index
    %c137 = arith.constant 137 : index
    %128 = vector.load %arg1[%c0_122, %c0_123, %c137] : memref<1x3x490xbf16, #tpu.memory_space<vmem>>, vector<1x3x352xbf16>
    %129 = vector.shape_cast %128 : vector<1x3x352xbf16> to vector<3x352xbf16>
    %c0_124 = arith.constant 0 : index
    %c0_125 = arith.constant 0 : index
    %c138 = arith.constant 138 : index
    %130 = vector.load %arg1[%c0_124, %c0_125, %c138] : memref<1x3x490xbf16, #tpu.memory_space<vmem>>, vector<1x3x352xbf16>
    %131 = vector.shape_cast %130 : vector<1x3x352xbf16> to vector<3x352xbf16>
    %132 = tpu.concatenate %119, %121, %123, %125, %127, %129, %131 in 0 : vector<3x352xbf16>, vector<3x352xbf16>, vector<3x352xbf16>, vector<3x352xbf16>, vector<3x352xbf16>, vector<3x352xbf16>, vector<3x352xbf16> -> vector<21x352xbf16>
    %c6_126 = arith.constant 6 : index
    %c0_127 = arith.constant 0 : index
    %c0_128 = arith.constant 0 : index
    %133 = vector.load %arg2[%c6_126, %c0_127, %c0_128] : memref<7x8x21xbf16, #tpu.memory_space<vmem>>, vector<1x8x21xbf16>
    %134 = vector.shape_cast %133 : vector<1x8x21xbf16> to vector<8x21xbf16>
    %cst_129 = arith.constant dense<0.000000e+00> : vector<8x352xf32>
    %135 = tpu.matmul %134, %132, %cst_129 {dimension_numbers = #tpu.dot_dimension_numbers<[1], [0], [0], [1], [0, 0, 1, 1], [], []>} : vector<8x21xbf16>, vector<21x352xbf16>, vector<8x352xf32> -> vector<8x352xf32>
    %136 = arith.addf %117, %135 : vector<8x352xf32>
    %137 = vector.broadcast %0 : vector<1x352xf32> to vector<8x352xf32>
    %138 = arith.mulf %136, %137 : vector<8x352xf32>
    %cst_130 = arith.constant dense<0.000000e+00> : vector<8xf32>
    %139 = vector.multi_reduction <add>, %138, %cst_130 [1] : vector<8x352xf32> to vector<8xf32>
    %140 = vector.shape_cast %139 : vector<8xf32> to vector<8x1xf32>
    %141 = arith.addf %1, %140 : vector<8x1xf32>
    %142 = arith.mulf %138, %138 : vector<8x352xf32>
    %cst_131 = arith.constant dense<0.000000e+00> : vector<8xf32>
    %143 = vector.multi_reduction <add>, %142, %cst_131 [1] : vector<8x352xf32> to vector<8xf32>
    %144 = vector.shape_cast %143 : vector<8xf32> to vector<8x1xf32>
    %145 = arith.addf %2, %144 : vector<8x1xf32>
    %146 = tpu.concatenate %141, %145 in 1 : vector<8x1xf32>, vector<8x1xf32> -> vector<8x2xf32>
    %147 = vector.shape_cast %146 : vector<8x2xf32> to vector<1x8x2xf32>
    %c0_132 = arith.constant 0 : index
    %c0_133 = arith.constant 0 : index
    %c0_134 = arith.constant 0 : index
    %148 = vector.load %arg4[%c0_132, %c0_133, %c0_134] : memref<1x8x2xf32, #tpu.memory_space<vmem>>, vector<1x8x2xf32>
    tpu.vector_store %arg4[%c0_132, %c0_133, %c0_134], %147 {strides = array<i32>} : memref<1x8x2xf32, #tpu.memory_space<vmem>>, vector<1x8x2xf32>,
    return
  }
  func.func @transform_0(%arg0: i32) -> (i32, i32, i32) {
    %c0_i32 = arith.constant 0 : i32
    %c0_i32_0 = arith.constant 0 : i32
    %c0_i32_1 = arith.constant 0 : i32
    return %arg0, %c0_i32, %c0_i32_0 : i32, i32, i32
  }
  func.func @transform_1(%arg0: i32) -> (i32, i32, i32) {
    %c0_i32 = arith.constant 0 : i32
    %c0_i32_0 = arith.constant 0 : i32
    %c0_i32_1 = arith.constant 0 : i32
    %c0_i32_2 = arith.constant 0 : i32
    return %c0_i32, %c0_i32_0, %c0_i32_1 : i32, i32, i32
  }
  func.func @transform_2(%arg0: i32) -> (i32, i32) {
    %c0_i32 = arith.constant 0 : i32
    %c0_i32_0 = arith.constant 0 : i32
    %c0_i32_1 = arith.constant 0 : i32
    return %c0_i32, %c0_i32_0 : i32, i32
  }
  func.func @transform_3(%arg0: i32) -> (i32, i32, i32) {
    %c0_i32 = arith.constant 0 : i32
    %c0_i32_0 = arith.constant 0 : i32
    %c0_i32_1 = arith.constant 0 : i32
    return %arg0, %c0_i32, %c0_i32_0 : i32, i32, i32
  }
}

</mosaic_0001>

<llo_original>
// kernel: tpu_custom_call.1
$region0: #{tpu_custom_call.1}
  #allocation0 [shape = 'u32[]', space=smem, size = 0x4, offset = 0x4, fixed_abs, tag = 'smem constant byte address 0x4 - core index']
  #allocation1 [shape = 'u32[144,128]{1,0:T(1,128)}', space=vmem, size = 0x12000, scoped, tag = 'internal scratch']
  %s0 = inlined_call_operand.vmem [shape: bf16[2,3,490], index: 0, kind: input, shape index: {}]
  %s1 = inlined_call_operand.vmem [shape: bf16[7,8,21], index: 1, kind: input, shape index: {}]
  %s2 = inlined_call_operand.vmem [shape: f32[1,352], index: 2, kind: input, shape index: {}]
  %s3 = inlined_call_operand.vmem [shape: f32[2,8,2], index: 3, kind: output, shape index: {}]
  %s4 = sld [smem:[#allocation0]]
  $region45: #{tpu_custom_call.1} parent=0
    _
  %s6 = ssub.s32 1, %s4
  %s7 = scalar_select 0, %s6, %s4
  loop: start=0, step=1, limit=4
  $region2: #{tpu_custom_call.1} parent=0 // loop_pre_header
    _
  $region3: #{tpu_custom_call.1} parent=0 // loop_header
    %s9 = sphi 0, %s13
    %p10 = scmp.ge.s32.totalorder %s9, 4
    %s19 = sphi 0, %s21
    %s22 = sphi 0, %s19
    %s23 = sphi 0, %s22
    %s39 = sphi 0, %s23
    %s43 = sphi 0, %s43
    %s45 = sphi 0, %s43
    %s46 = sphi 0, %s45
    %s60 = sphi 0, %s46
    %s64 = sphi 0, %s64
    %s66 = sphi 0, %s64
    %s67 = sphi 0, %s66
    %s81 = sphi 0, %s67
    %s87 = sphi 0, %s89
    %s90 = sphi 0, %s87
    %s91 = sphi 0, %s90
    %s107 = sphi 0, %s91
  $region4: #{tpu_custom_call.1} parent=0 // loop_header_branch
    %12 = sbr.rel (%p10) target = $region8
  $region5: #{tpu_custom_call.1} parent=0 // loop_body
    %s14 = ssub.s32 %s9, 1
    %s15 = ssub.s32 %s9, 2
    %s16 = sadd.s32 %s9, 1
    %s17 = ssub.s32 %s9, %s16
    %p18 = scmp.eq.s32.totalorder %s17, 0
    %s20 = sadd.s32 %s19, 1
    %s21 = scalar_select %p18, %s19, %s20
    %p24 = pneg %p18
    %p25 = scmp.eq.s32.totalorder %s9, 1
    %p26 = por %p24, %p25
    %p27 = scmp.ne.s32.totalorder %s19, %s22
    %p28 = scmp.eq.s32.totalorder %s9, 0
    %p29 = por %p27, %p28
    %p30 = scmp.ne.s32.totalorder %s19, %s22
    %p31 = scmp.eq.s32.totalorder %s14, 1
    %p32 = por %p30, %p31
    %p33 = scmp.ne.s32.totalorder %s22, %s23
    %p34 = scmp.eq.s32.totalorder %s14, 0
    %p35 = por %p33, %p34
    %p36 = scmp.ne.s32.totalorder %s22, %s23
    %p37 = scmp.eq.s32.totalorder %s15, 1
    %p38 = por %p36, %p37
    %p40 = scmp.ne.s32.totalorder %s23, %s39
    %p41 = scmp.eq.s32.totalorder %s15, 0
    %p42 = por %p40, %p41
    %s44 = sadd.s32 %s43, 1
    %p47 = scmp.eq.s32.totalorder %s9, 1
    %p48 = scmp.ne.s32.totalorder %s43, %s45
    %p49 = scmp.eq.s32.totalorder %s9, 0
    %p50 = por %p48, %p49
    %p51 = scmp.ne.s32.totalorder %s43, %s45
    %p52 = scmp.eq.s32.totalorder %s14, 1
    %p53 = por %p51, %p52
    %p54 = scmp.ne.s32.totalorder %s45, %s46
    %p55 = scmp.eq.s32.totalorder %s14, 0
    %p56 = por %p54, %p55
    %p57 = scmp.ne.s32.totalorder %s45, %s46
    %p58 = scmp.eq.s32.totalorder %s15, 1
    %p59 = por %p57, %p58
    %p61 = scmp.ne.s32.totalorder %s46, %s60
    %p62 = scmp.eq.s32.totalorder %s15, 0
    %p63 = por %p61, %p62
    %s65 = sadd.s32 %s64, 1
    %p68 = scmp.eq.s32.totalorder %s9, 1
    %p69 = scmp.ne.s32.totalorder %s64, %s66
    %p70 = scmp.eq.s32.totalorder %s9, 0
    %p71 = por %p69, %p70
    %p72 = scmp.ne.s32.totalorder %s64, %s66
    %p73 = scmp.eq.s32.totalorder %s14, 1
    %p74 = por %p72, %p73
    %p75 = scmp.ne.s32.totalorder %s66, %s67
    %p76 = scmp.eq.s32.totalorder %s14, 0
    %p77 = por %p75, %p76
    %p78 = scmp.ne.s32.totalorder %s66, %s67
    %p79 = scmp.eq.s32.totalorder %s15, 1
    %p80 = por %p78, %p79
    %p82 = scmp.ne.s32.totalorder %s67, %s81
    %p83 = scmp.eq.s32.totalorder %s15, 0
    %p84 = por %p82, %p83
    %s85 = ssub.s32 %s9, %s16
    %p86 = scmp.eq.s32.totalorder %s85, 0
    %s88 = sadd.s32 %s87, 1
    %s89 = scalar_select %p86, %s87, %s88
    %p92 = pneg %p86
    %p93 = scmp.eq.s32.totalorder %s9, 1
    %p94 = por %p92, %p93
    %p95 = scmp.ne.s32.totalorder %s87, %s90
    %p96 = scmp.eq.s32.totalorder %s9, 0
    %p97 = por %p95, %p96
    %p98 = scmp.ne.s32.totalorder %s87, %s90
    %p99 = scmp.eq.s32.totalorder %s14, 1
    %p100 = por %p98, %p99
    %p101 = scmp.ne.s32.totalorder %s90, %s91
    %p102 = scmp.eq.s32.totalorder %s14, 0
    %p103 = por %p101, %p102
    %p104 = scmp.ne.s32.totalorder %s90, %s91
    %p105 = scmp.eq.s32.totalorder %s15, 1
    %p106 = por %p104, %p105
    %p108 = scmp.ne.s32.totalorder %s91, %s107
    %p109 = scmp.eq.s32.totalorder %s15, 0
    %p110 = por %p108, %p109
    %p111 = scmp.le.s32.totalorder 1, %s9
    %p112 = scmp.lt.s32.totalorder %s9, 3
    %p113 = pnand %p111, %p112
    %p114 = pneg %p113
    // Predicated region
    $region9: #{tpu_custom_call.1} parent=5 // pred_check
      _
    $region10: #{tpu_custom_call.1} parent=5 // pred_check_branch
      %116 = sbr.rel (%p113) target = $region12
    $region11: #{tpu_custom_call.1} parent=5 // pred_region
      %s117 = ssub.s32 %s9, 1
      // Predicated region
      $region13: #{tpu_custom_call.1} parent=11 // pred_check
        %p118 = pneg %p56
      $region14: #{tpu_custom_call.1} parent=11 // pred_check_branch
        %120 = sbr.rel (%p118) target = $region16
      $region15: #{tpu_custom_call.1} parent=11 // pred_region
        _
      $region16: #{tpu_custom_call.1} parent=11 // pred_fallthru
        _
      // Predicated region
      $region17: #{tpu_custom_call.1} parent=11 // pred_check
        %p121 = pneg %p77
      $region18: #{tpu_custom_call.1} parent=11 // pred_check_branch
        %123 = sbr.rel (%p121) target = $region20
      $region19: #{tpu_custom_call.1} parent=11 // pred_region
        _
      $region20: #{tpu_custom_call.1} parent=11 // pred_fallthru
        _
    $region12: #{tpu_custom_call.1} parent=5 // pred_fallthru
      _
    %p124 = scmp.lt.s32.totalorder %s9, 2
    // Predicated region
    $region21: #{tpu_custom_call.1} parent=5 // pred_check
      %p125 = pneg %p124
    $region22: #{tpu_custom_call.1} parent=5 // pred_check_branch
      %127 = sbr.rel (%p125) target = $region24
    $region23: #{tpu_custom_call.1} parent=5 // pred_region
      // Predicated region
      $region25: #{tpu_custom_call.1} parent=23 // pred_check
        %p128 = pneg %p29
      $region26: #{tpu_custom_call.1} parent=23 // pred_check_branch
        %130 = sbr.rel (%p128) target = $region28
      $region27: #{tpu_custom_call.1} parent=23 // pred_region
        %p131 = scmp.lt.s32.totalorder %s9, 1
        %s132 = scalar_select %p131, %s9, 1
        %s133 = smul.addr %s132, 4
        %s134 = smul.addr %s133, 2
        %s135 = scalar_lea.vmem %s0, %s134
      $region28: #{tpu_custom_call.1} parent=23 // pred_fallthru
        _
    $region24: #{tpu_custom_call.1} parent=5 // pred_fallthru
      _
    %p136 = scmp.le.s32.totalorder 1, %s9
    %p137 = scmp.lt.s32.totalorder %s9, 3
    %p138 = pnand %p136, %p137
    %p139 = pneg %p138
    // Predicated region
    $region29: #{tpu_custom_call.1} parent=5 // pred_check
      _
    $region30: #{tpu_custom_call.1} parent=5 // pred_check_branch
      %141 = sbr.rel (%p138) target = $region32
    $region31: #{tpu_custom_call.1} parent=5 // pred_region
      %s142 = ssub.s32 %s9, 1
      %p143 = scmp.lt.s32.totalorder %s14, 1
      %s144 = scalar_select %p143, %s14, 1
      %s145 = smul.addr %s144, 4
      %s146 = smul.addr %s145, 2
      %s147 = scalar_lea.vmem %s0, %s146
      %p148 = pneg %p35
      %p149 = pneg %p32
      %p150 = pneg %p56
      %p151 = pneg %p53
      %p152 = pneg %p77
      %p153 = pneg %p74
      %p154 = pneg %p103
      %p155 = pneg %p100
      %p156 = scmp.lt.s32.totalorder %s14, 1
      %s157 = scalar_select %p156, %s14, 1
      %s158 = smul.addr %s157, 8
      %s159 = scalar_lea.vmem %s3, %s158
      %p160 = scmp.lt.s32.totalorder %s14, 1
      %s161 = scalar_select %p160, %s14, 1
      %s162 = smul.addr %s161, 4
      %s163 = smul.addr %s162, 2
      %s164 = scalar_lea.vmem %s0, %s163
      %p165 = scmp.lt.s32.totalorder %s14, 1
      %s166 = scalar_select %p165, %s14, 1
      %s167 = smul.addr %s166, 8
      %s168 = scalar_lea.vmem %s3, %s167
      %v170 = vld [vmem:[%s2] sm:$0x7]
      %v171 = vld [vmem:[%s164] sm:$0x3f]
      %v173 = vcombine.high %v171, %v171
      %v175 = vunpack.c.l.s4 1983009808
      %v176 = vunpack.c.0.s8 %v175
      %v177 = vlaneseq
      %v178 = vshrl.u32 %v177, 7
      %v179 = vsub.s32 %v176, %v178
      %v180 = vrot.slane %v171, %v179
      %v182 = vunpack.c.l.s4 1983009808
      %v183 = vunpack.c.0.s8 %v182
      %v184 = vlaneseq
      %v185 = vshrl.u32 %v184, 7
      %v186 = vsub.s32 %v183, %v185
      %v187 = vrot.slane %v173, %v186
      %v188 = vcombine.high %v180, %v180
      %v193 = vshrl.u32 %v180, 16
      %v195 = vrot.slane %v193, 6
      %v196 = vshll.u32 %v180, 16
      %v198 = vrot.slane %v196, 7
      %v199 = vor.u32 %v195, %v198
      %v201 = vshrl.u32 %v188, 16
      %v203 = vrot.slane %v201, 6
      %v204 = vshll.u32 %v188, 16
      %v206 = vrot.slane %v204, 7
      %v207 = vor.u32 %v203, %v206
      %v209 = vshrl.u32 %v187, 16
      %v211 = vrot.slane %v209, 6
      %v212 = vshll.u32 %v187, 16
      %v214 = vrot.slane %v212, 7
      %v215 = vor.u32 %v211, %v214
      %216 = vrot.lane.b32.xlu0 %v199, 127
      %v217 = vpop.permute.xlu0 %216
      %218 = vrot.lane.b32.xlu0 %v207, 127
      %v219 = vpop.permute.xlu0 %218
      %220 = vrot.lane.b32.xlu0 %v215, 127
      %v221 = vpop.permute.xlu0 %220
      %vm222 = vcmask 1039360
      %v223 = vsel %vm222, %v217, %v219
      %v224 = vsel %vm222, %v219, %v221
      %v228 = vrot.slane %v180, 5
      %v229 = vrot.slane %v188, 5
      %v230 = vrot.slane %v187, 5
      %231 = vrot.lane.b32.xlu0 %v228, 126
      %v232 = vpop.permute.xlu0 %231
      %233 = vrot.lane.b32.xlu0 %v229, 126
      %v234 = vpop.permute.xlu0 %233
      %235 = vrot.lane.b32.xlu0 %v230, 126
      %v236 = vpop.permute.xlu0 %235
      %vm237 = vcmask 1031168
      %v238 = vsel %vm237, %v232, %v234
      %v239 = vsel %vm237, %v234, %v236
      %v240 = vrot.slane %v193, 3
      %v241 = vrot.slane %v196, 4
      %v242 = vor.u32 %v240, %v241
      %v243 = vrot.slane %v201, 3
      %v244 = vrot.slane %v204, 4
      %v245 = vor.u32 %v243, %v244
      %v246 = vrot.slane %v209, 3
      %v247 = vrot.slane %v212, 4
      %v248 = vor.u32 %v246, %v247
      %249 = vrot.lane.b32.xlu0 %v242, 125
      %v250 = vpop.permute.xlu0 %249
      %251 = vrot.lane.b32.xlu0 %v245, 125
      %v252 = vpop.permute.xlu0 %251
      %253 = vrot.lane.b32.xlu0 %v248, 125
      %v254 = vpop.permute.xlu0 %253
      %vm255 = vcmask 1022976
      %v256 = vsel %vm255, %v250, %v252
      %v257 = vsel %vm255, %v252, %v254
      %v261 = vcombine.low %v171, %v171
      %v263 = vunpack.c.l.s4 1983009808
      %v264 = vunpack.c.0.s8 %v263
      %v265 = vlaneseq
      %v266 = vshrl.u32 %v265, 7
      %v267 = vsub.s32 %v264, %v266
      %v268 = vrot.slane %v261, %v267
      %v269 = vcombine.low %v268, %v268
      %v270 = vcombine.low %v180, %v180
      %271 = vrot.lane.b32.xlu0 %v269, 124
      %v272 = vpop.permute.xlu0 %271
      %273 = vrot.lane.b32.xlu0 %v268, 124
      %v274 = vpop.permute.xlu0 %273
      %275 = vrot.lane.b32.xlu0 %v270, 124
      %v276 = vpop.permute.xlu0 %275
      %vm277 = vcmask 1014784
      %v278 = vsel %vm277, %v272, %v274
      %v279 = vsel %vm277, %v274, %v276
      %v280 = vrot.slane %v196, 1
      %v281 = vrot.slane %v204, 1
      %v282 = vrot.slane %v212, 1
      %v283 = vor.u32 %v193, %v280
      %v284 = vor.u32 %v201, %v281
      %v285 = vor.u32 %v209, %v282
      %286 = vrot.lane.b32.xlu0 %v280, 123
      %v287 = vpop.permute.xlu0 %286
      %288 = vrot.lane.b32.xlu0 %v281, 123
      %v289 = vpop.permute.xlu0 %288
      %290 = vrot.lane.b32.xlu0 %v282, 123
      %v291 = vpop.permute.xlu0 %290
      %292 = vrot.lane.b32.xlu0 %v283, 123
      %v293 = vpop.permute.xlu0 %292
      %294 = vrot.lane.b32.xlu0 %v284, 123
      %v295 = vpop.permute.xlu0 %294
      %296 = vrot.lane.b32.xlu0 %v285, 123
      %v297 = vpop.permute.xlu0 %296
      %vm298 = vcmask 1006592
      %v299 = vsel %vm298, %v287, %v289
      %v300 = vsel %vm298, %v289, %v291
      %v301 = vsel %vm298, %v293, %v295
      %v302 = vsel %vm298, %v295, %v297
      %v306 = vrot.slane %v180, 7
      %v307 = vrot.slane %v188, 7
      %v308 = vrot.slane %v187, 7
      %309 = vrot.lane.b32.xlu0 %v306, 122
      %v310 = vpop.permute.xlu0 %309
      %311 = vrot.lane.b32.xlu0 %v307, 122
      %v312 = vpop.permute.xlu0 %311
      %313 = vrot.lane.b32.xlu0 %v308, 122
      %v314 = vpop.permute.xlu0 %313
      %vm315 = vcmask 998400
      %v316 = vsel %vm315, %v310, %v312
      %v317 = vsel %vm315, %v312, %v314
      %vm318 = vcmask 1041408
      %vm319 = vsmask.f32 1280
      %vm320 = vmand %vm318, %vm319
      %v321 = vsel %vm320, %v180, %v223
      %v322 = vsel %vm320, %v188, %v224
      %v323 = vsel %vm320, %v187, %v221
      %vm324 = vcmask 1042432
      %v327 = vsel %vm324, %v321, %v238
      %v331 = vsel %vm324, %v322, %v239
      %v335 = vsel %vm324, %v323, %v236
      %vm337 = vcmask 1044480
      %vm338 = vsmask.f32 4352
      %vm339 = vmand %vm337, %vm338
      %v340 = vsel %vm339, %v327, %v256
      %v341 = vsel %vm339, %v331, %v257
      %v342 = vsel %vm339, %v335, %v254
      %vm343 = vcmask 1045504
      %v346 = vsel %vm343, %v340, %v278
      %v350 = vsel %vm343, %v341, %v279
      %v354 = vsel %vm343, %v342, %v276
      %vm356 = vcmask 1047552
      %vm357 = vsmask.f32 7424
      %vm358 = vmand %vm356, %vm357
      %v359 = vsel %vm358, %v346, %v299
      %v360 = vsel %vm358, %v350, %v300
      %v361 = vsel %vm358, %v354, %v291
      %vm362 = vcmask 1040384
      %v365 = vsel %vm362, %v301, %v316
      %v368 = vsel %vm362, %v302, %v317
      %v371 = vsel %vm362, %v297, %v314
      %v372 = vld [vmem:[%s1] sm:$0xf]
      %s373 = scalar_lea.vmem %s1, 4
      %v374 = vld [vmem:[%s373] sm:$0xf]
      %381 = vrot.lane.b32.xlu0 %v359, 106
      %v382 = vpop.permute.xlu0 %381
      %383 = vrot.lane.b32.xlu0 %v360, 106
      %v384 = vpop.permute.xlu0 %383
      %385 = vrot.lane.b32.xlu0 %v361, 106
      %v386 = vpop.permute.xlu0 %385
      %387 = vrot.lane.b32.xlu0 %v365, 106
      %v388 = vpop.permute.xlu0 %387
      %389 = vrot.lane.b32.xlu0 %v368, 106
      %v390 = vpop.permute.xlu0 %389
      %391 = vrot.lane.b32.xlu0 %v371, 106
      %v392 = vpop.permute.xlu0 %391
      %vm393 = vcmask 867328
      %v394 = vsel %vm393, %v382, %v384
      %v395 = vsel %vm393, %v384, %v386
      %v396 = vsel %vm393, %v388, %v390
      %v397 = vsel %vm393, %v390, %v392
      %vm401 = vcmask 171008
      %v403 = vsel %vm401, %v374, 0
      %vm405 = vcmask 1041408
      %v406 = vsel %vm405, 4294967295, 65535
      %v407 = vsel %vm324, %v406, 0
      %v409 = vand.u32 %v396, %v407
      %v412 = vand.u32 %v397, %v407
      %v415 = vand.u32 %v392, %v407
      %417 = vmatprep.subr.bf16.mxu0 %v395
      %418 = vmatpush1.bf16.msra.mxu0 %v394
      %419 = vmatprep.subr.bf16.mxu0 %v412
      %420 = vmatpush1.bf16.msra.mxu0 %v409
      %421 = vmatprep.subr.bf16.mxu0 0
      %422 = vmatpush1.bf16.msra.mxu0 0
      %423 = vmatprep.subr.bf16.mxu0 0
      %424 = vmatpush1.bf16.msra.mxu0 0
      %425 = vmatprep.subr.bf16.mxu0 0
      %426 = vmatpush1.bf16.msra.mxu0 0
      %427 = vmatprep.subr.bf16.mxu0 0
      %428 = vmatpush1.bf16.msra.mxu0 0
      %429 = vmatprep.subr.bf16.mxu0 0
      %430 = vmatpush1.bf16.msra.mxu0 0
      %431 = vmatprep.subr.bf16.mxu0 0
      %432 = vmatpush1.bf16.msra.mxu0 0
      %433 = vmatprep.subr.bf16.mxu0 0
      %434 = vmatpush1.bf16.msra.mxu0 0
      %435 = vmatprep.subr.bf16.mxu0 0
      %436 = vmatpush1.bf16.msra.mxu0 0
      %437 = vmatprep.subr.bf16.mxu0 0
      %438 = vmatpush1.bf16.msra.mxu0 0
      %439 = vmatprep.subr.bf16.mxu0 0
      %440 = vmatpush1.bf16.msra.mxu0 0
      %441 = vmatprep.subr.bf16.mxu0 0
      %442 = vmatpush1.bf16.msra.mxu0 0
      %443 = vmatprep.subr.bf16.mxu0 0
      %444 = vmatpush1.bf16.msra.mxu0 0
      %445 = vmatprep.subr.bf16.mxu0 0
      %446 = vmatpush1.bf16.msra.mxu0 0
      %447 = vmatprep.subr.bf16.mxu0 0
      %448 = vmatpush1.bf16.msra.mxu0 0
      %449 = vmatprep.mubr.bf16.mxu0 0
      %450 = vmatmul.mubr.bf16.gmra.mrb[0].mxu0 %v403
      %v451 = vpop.f32.mrb[0].mxu0
      %v452 = vadd.f32 0.0, %v451
      %v453 = vpop.f32.mrb[0].mxu0
      %v454 = vadd.f32 0.0, %v453
      %v455 = vpop.f32.mrb[0].mxu0
      %v456 = vpop.f32.mrb[0].mxu0
      %457 = vdwg.mxu0
      %458 = vmatprep.subr.bf16.mxu0 0
      %459 = vmatpush1.bf16.msra.mxu0 %v386
      %460 = vmatprep.subr.bf16.mxu0 0
      %461 = vmatpush1.bf16.msra.mxu0 %v415
      %462 = vmatprep.subr.bf16.mxu0 0
      %463 = vmatpush1.bf16.msra.mxu0 0
      %464 = vmatprep.subr.bf16.mxu0 0
      %465 = vmatpush1.bf16.msra.mxu0 0
      %466 = vmatprep.subr.bf16.mxu0 0
      %467 = vmatpush1.bf16.msra.mxu0 0
      %468 = vmatprep.subr.bf16.mxu0 0
      %469 = vmatpush1.bf16.msra.mxu0 0
      %470 = vmatprep.subr.bf16.mxu0 0
      %471 = vmatpush1.bf16.msra.mxu0 0
      %472 = vmatprep.subr.bf16.mxu0 0
      %473 = vmatpush1.bf16.msra.mxu0 0
      %474 = vmatprep.subr.bf16.mxu0 0
      %475 = vmatpush1.bf16.msra.mxu0 0
      %476 = vmatprep.subr.bf16.mxu0 0
      %477 = vmatpush1.bf16.msra.mxu0 0
      %478 = vmatprep.subr.bf16.mxu0 0
      %479 = vmatpush1.bf16.msra.mxu0 0
      %480 = vmatprep.subr.bf16.mxu0 0
      %481 = vmatpush1.bf16.msra.mxu0 0
      %482 = vmatprep.subr.bf16.mxu0 0
      %483 = vmatpush1.bf16.msra.mxu0 0
      %484 = vmatprep.subr.bf16.mxu0 0
      %485 = vmatpush1.bf16.msra.mxu0 0
      %486 = vmatprep.subr.bf16.mxu0 0
      %487 = vmatpush1.bf16.msra.mxu0 0
      %488 = vmatprep.subr.bf16.mxu0 0
      %489 = vmatpush1.bf16.msra.mxu0 0
      %490 = vmatprep.mubr.bf16.mxu0 0
      %491 = vmatmul.mubr.bf16.gmra.mrb[0].mxu0 %v403
      %v492 = vpop.f32.mrb[0].mxu0
      %v493 = vadd.f32 0.0, %v492
      %v494 = vpop.f32.mrb[0].mxu0
      %v495 = vpop.f32.mrb[0].mxu0
      %v496 = vpop.f32.mrb[0].mxu0
      %497 = vdwg.mxu0
      %v499 = vsel %vm401, %v372, 0
      %v501 = vand.u32 %v365, %v407
      %v503 = vand.u32 %v368, %v407
      %v505 = vand.u32 %v371, %v407
      %507 = vmatprep.subr.bf16.mxu0 %v360
      %508 = vmatpush1.bf16.msra.mxu0 %v359
      %509 = vmatprep.subr.bf16.mxu0 %v503
      %510 = vmatpush1.bf16.msra.mxu0 %v501
      %511 = vmatprep.subr.bf16.mxu0 0
      %512 = vmatpush1.bf16.msra.mxu0 0
      %513 = vmatprep.subr.bf16.mxu0 0
      %514 = vmatpush1.bf16.msra.mxu0 0
      %515 = vmatprep.subr.bf16.mxu0 0
      %516 = vmatpush1.bf16.msra.mxu0 0
      %517 = vmatprep.subr.bf16.mxu0 0
      %518 = vmatpush1.bf16.msra.mxu0 0
      %519 = vmatprep.subr.bf16.mxu0 0
      %520 = vmatpush1.bf16.msra.mxu0 0
      %521 = vmatprep.subr.bf16.mxu0 0
      %522 = vmatpush1.bf16.msra.mxu0 0
      %523 = vmatprep.subr.bf16.mxu0 0
      %524 = vmatpush1.bf16.msra.mxu0 0
      %525 = vmatprep.subr.bf16.mxu0 0
      %526 = vmatpush1.bf16.msra.mxu0 0
      %527 = vmatprep.subr.bf16.mxu0 0
      %528 = vmatpush1.bf16.msra.mxu0 0
      %529 = vmatprep.subr.bf16.mxu0 0
      %530 = vmatpush1.bf16.msra.mxu0 0
      %531 = vmatprep.subr.bf16.mxu0 0
      %532 = vmatpush1.bf16.msra.mxu0 0
      %533 = vmatprep.subr.bf16.mxu0 0
      %534 = vmatpush1.bf16.msra.mxu0 0
      %535 = vmatprep.subr.bf16.mxu0 0
      %536 = vmatpush1.bf16.msra.mxu0 0
      %537 = vmatprep.subr.bf16.mxu0 0
      %538 = vmatpush1.bf16.msra.mxu0 0
      %539 = vmatprep.mubr.bf16.mxu0 0
      %540 = vmatmul.mubr.bf16.gmra.mrb[0].mxu0 %v499
      %v541 = vpop.f32.mrb[0].mxu0
      %v542 = vadd.f32 %v452, %v541
      %v543 = vpop.f32.mrb[0].mxu0
      %v544 = vadd.f32 %v454, %v543
      %v545 = vpop.f32.mrb[0].mxu0
      %v546 = vpop.f32.mrb[0].mxu0
      %547 = vdwg.mxu0
      %548 = vmatprep.subr.bf16.mxu0 0
      %549 = vmatpush1.bf16.msra.mxu0 %v361
      %550 = vmatprep.subr.bf16.mxu0 0
      %551 = vmatpush1.bf16.msra.mxu0 %v505
      %552 = vmatprep.subr.bf16.mxu0 0
      %553 = vmatpush1.bf16.msra.mxu0 0
      %554 = vmatprep.subr.bf16.mxu0 0
      %555 = vmatpush1.bf16.msra.mxu0 0
      %556 = vmatprep.subr.bf16.mxu0 0
      %557 = vmatpush1.bf16.msra.mxu0 0
      %558 = vmatprep.subr.bf16.mxu0 0
      %559 = vmatpush1.bf16.msra.mxu0 0
      %560 = vmatprep.subr.bf16.mxu0 0
      %561 = vmatpush1.bf16.msra.mxu0 0
      %562 = vmatprep.subr.bf16.mxu0 0
      %563 = vmatpush1.bf16.msra.mxu0 0
      %564 = vmatprep.subr.bf16.mxu0 0
      %565 = vmatpush1.bf16.msra.mxu0 0
      %566 = vmatprep.subr.bf16.mxu0 0
      %567 = vmatpush1.bf16.msra.mxu0 0
      %568 = vmatprep.subr.bf16.mxu0 0
      %569 = vmatpush1.bf16.msra.mxu0 0
      %570 = vmatprep.subr.bf16.mxu0 0
      %571 = vmatpush1.bf16.msra.mxu0 0
      %572 = vmatprep.subr.bf16.mxu0 0
      %573 = vmatpush1.bf16.msra.mxu0 0
      %574 = vmatprep.subr.bf16.mxu0 0
      %575 = vmatpush1.bf16.msra.mxu0 0
      %576 = vmatprep.subr.bf16.mxu0 0
      %577 = vmatpush1.bf16.msra.mxu0 0
      %578 = vmatprep.subr.bf16.mxu0 0
      %579 = vmatpush1.bf16.msra.mxu0 0
      %580 = vmatprep.mubr.bf16.mxu0 0
      %581 = vmatmul.mubr.bf16.gmra.mrb[0].mxu0 %v499
      %v582 = vpop.f32.mrb[0].mxu0
      %v583 = vadd.f32 %v493, %v582
      %v584 = vpop.f32.mrb[0].mxu0
      %v585 = vpop.f32.mrb[0].mxu0
      %v586 = vpop.f32.mrb[0].mxu0
      %587 = vdwg.mxu0
      %v588 = vld [vmem:[%s164] sm:$0xff]
      %v590 = vcombine.high %v588, %v588
      %v592 = vunpack.c.l.s4 1983009808
      %v593 = vunpack.c.0.s8 %v592
      %v594 = vlaneseq
      %v595 = vshrl.u32 %v594, 7
      %v596 = vsub.s32 %v593, %v595
      %v597 = vrot.slane %v588, %v596
      %v599 = vunpack.c.l.s4 1983009808
      %v600 = vunpack.c.0.s8 %v599
      %v601 = vlaneseq
      %v602 = vshrl.u32 %v601, 7
      %v603 = vsub.s32 %v600, %v602
      %v604 = vrot.slane %v590, %v603
      %v605 = vcombine.high %v597, %v597
      %v606 = vcombine.high %v604, %v604
      %v612 = vshrl.u32 %v597, 16
      %v614 = vrot.slane %v612, 6
      %v615 = vshll.u32 %v597, 16
      %v617 = vrot.slane %v615, 7
      %v618 = vor.u32 %v614, %v617
      %v620 = vshrl.u32 %v605, 16
      %v622 = vrot.slane %v620, 6
      %v623 = vshll.u32 %v605, 16
      %v625 = vrot.slane %v623, 7
      %v626 = vor.u32 %v622, %v625
      %v628 = vshrl.u32 %v604, 16
      %v630 = vrot.slane %v628, 6
      %v631 = vshll.u32 %v604, 16
      %v633 = vrot.slane %v631, 7
      %v634 = vor.u32 %v630, %v633
      %v636 = vshrl.u32 %v606, 16
      %v638 = vrot.slane %v636, 6
      %v639 = vshll.u32 %v606, 16
      %v641 = vrot.slane %v639, 7
      %v642 = vor.u32 %v638, %v641
      %643 = vrot.lane.b32.xlu0 %v618, 127
      %v644 = vpop.permute.xlu0 %643
      %645 = vrot.lane.b32.xlu0 %v626, 127
      %v646 = vpop.permute.xlu0 %645
      %647 = vrot.lane.b32.xlu0 %v634, 127
      %v648 = vpop.permute.xlu0 %647
      %649 = vrot.lane.b32.xlu0 %v642, 127
      %v650 = vpop.permute.xlu0 %649
      %v651 = vsel %vm222, %v644, %v646
      %v652 = vsel %vm222, %v646, %v648
      %v653 = vsel %vm222, %v648, %v650
      %v658 = vrot.slane %v597, 5
      %v659 = vrot.slane %v605, 5
      %v660 = vrot.slane %v604, 5
      %v661 = vrot.slane %v606, 5
      %662 = vrot.lane.b32.xlu0 %v658, 126
      %v663 = vpop.permute.xlu0 %662
      %664 = vrot.lane.b32.xlu0 %v659, 126
      %v665 = vpop.permute.xlu0 %664
      %666 = vrot.lane.b32.xlu0 %v660, 126
      %v667 = vpop.permute.xlu0 %666
      %668 = vrot.lane.b32.xlu0 %v661, 126
      %v669 = vpop.permute.xlu0 %668
      %v670 = vsel %vm237, %v663, %v665
      %v671 = vsel %vm237, %v665, %v667
      %v672 = vsel %vm237, %v667, %v669
      %v673 = vrot.slane %v612, 3
      %v674 = vrot.slane %v615, 4
      %v675 = vor.u32 %v673, %v674
      %v676 = vrot.slane %v620, 3
      %v677 = vrot.slane %v623, 4
      %v678 = vor.u32 %v676, %v677
      %v679 = vrot.slane %v628, 3
      %v680 = vrot.slane %v631, 4
      %v681 = vor.u32 %v679, %v680
      %v682 = vrot.slane %v636, 3
      %v683 = vrot.slane %v639, 4
      %v684 = vor.u32 %v682, %v683
      %685 = vrot.lane.b32.xlu0 %v675, 125
      %v686 = vpop.permute.xlu0 %685
      %687 = vrot.lane.b32.xlu0 %v678, 125
      %v688 = vpop.permute.xlu0 %687
      %689 = vrot.lane.b32.xlu0 %v681, 125
      %v690 = vpop.permute.xlu0 %689
      %691 = vrot.lane.b32.xlu0 %v684, 125
      %v692 = vpop.permute.xlu0 %691
      %v693 = vsel %vm255, %v686, %v688
      %v694 = vsel %vm255, %v688, %v690
      %v695 = vsel %vm255, %v690, %v692
      %v700 = vcombine.low %v588, %v588
      %v702 = vunpack.c.l.s4 1983009808
      %v703 = vunpack.c.0.s8 %v702
      %v704 = vlaneseq
      %v705 = vshrl.u32 %v704, 7
      %v706 = vsub.s32 %v703, %v705
      %v707 = vrot.slane %v700, %v706
      %v708 = vcombine.low %v707, %v707
      %v709 = vcombine.low %v597, %v597
      %710 = vrot.lane.b32.xlu0 %v708, 124
      %v711 = vpop.permute.xlu0 %710
      %712 = vrot.lane.b32.xlu0 %v707, 124
      %v713 = vpop.permute.xlu0 %712
      %714 = vrot.lane.b32.xlu0 %v709, 124
      %v715 = vpop.permute.xlu0 %714
      %716 = vrot.lane.b32.xlu0 %v597, 124
      %v717 = vpop.permute.xlu0 %716
      %v718 = vsel %vm277, %v711, %v713
      %v719 = vsel %vm277, %v713, %v715
      %v720 = vsel %vm277, %v715, %v717
      %v721 = vrot.slane %v615, 1
      %v722 = vrot.slane %v623, 1
      %v723 = vrot.slane %v631, 1
      %v724 = vrot.slane %v639, 1
      %v725 = vor.u32 %v612, %v721
      %v726 = vor.u32 %v620, %v722
      %v727 = vor.u32 %v628, %v723
      %v728 = vor.u32 %v636, %v724
      %729 = vrot.lane.b32.xlu0 %v721, 123
      %v730 = vpop.permute.xlu0 %729
      %731 = vrot.lane.b32.xlu0 %v722, 123
      %v732 = vpop.permute.xlu0 %731
      %733 = vrot.lane.b32.xlu0 %v723, 123
      %v734 = vpop.permute.xlu0 %733
      %735 = vrot.lane.b32.xlu0 %v724, 123
      %v736 = vpop.permute.xlu0 %735
      %737 = vrot.lane.b32.xlu0 %v725, 123
      %v738 = vpop.permute.xlu0 %737
      %739 = vrot.lane.b32.xlu0 %v726, 123
      %v740 = vpop.permute.xlu0 %739
      %741 = vrot.lane.b32.xlu0 %v727, 123
      %v742 = vpop.permute.xlu0 %741
      %743 = vrot.lane.b32.xlu0 %v728, 123
      %v744 = vpop.permute.xlu0 %743
      %v745 = vsel %vm298, %v730, %v732
      %v746 = vsel %vm298, %v732, %v734
      %v747 = vsel %vm298, %v734, %v736
      %v748 = vsel %vm298, %v738, %v740
      %v749 = vsel %vm298, %v740, %v742
      %v750 = vsel %vm298, %v742, %v744
      %v755 = vrot.slane %v597, 7
      %v756 = vrot.slane %v605, 7
      %v757 = vrot.slane %v604, 7
      %v758 = vrot.slane %v606, 7
      %759 = vrot.lane.b32.xlu0 %v755, 122
      %v760 = vpop.permute.xlu0 %759
      %761 = vrot.lane.b32.xlu0 %v756, 122
      %v762 = vpop.permute.xlu0 %761
      %763 = vrot.lane.b32.xlu0 %v757, 122
      %v764 = vpop.permute.xlu0 %763
      %765 = vrot.lane.b32.xlu0 %v758, 122
      %v766 = vpop.permute.xlu0 %765
      %v767 = vsel %vm315, %v760, %v762
      %v768 = vsel %vm315, %v762, %v764
      %v769 = vsel %vm315, %v764, %v766
      %v770 = vsel %vm320, %v597, %v651
      %v771 = vsel %vm320, %v605, %v652
      %v772 = vsel %vm320, %v604, %v653
      %v773 = vsel %vm320, %v606, %v650
      %v776 = vsel %vm324, %v770, %v670
      %v780 = vsel %vm324, %v771, %v671
      %v784 = vsel %vm324, %v772, %v672
      %v788 = vsel %vm324, %v773, %v669
      %v790 = vsel %vm339, %v776, %v693
      %v791 = vsel %vm339, %v780, %v694
      %v792 = vsel %vm339, %v784, %v695
      %v793 = vsel %vm339, %v788, %v692
      %v796 = vsel %vm343, %v790, %v718
      %v800 = vsel %vm343, %v791, %v719
      %v804 = vsel %vm343, %v792, %v720
      %v808 = vsel %vm343, %v793, %v717
      %v810 = vsel %vm358, %v796, %v745
      %v811 = vsel %vm358, %v800, %v746
      %v812 = vsel %vm358, %v804, %v747
      %v813 = vsel %vm358, %v808, %v736
      %v816 = vsel %vm362, %v748, %v767
      %v819 = vsel %vm362, %v749, %v768
      %v822 = vsel %vm362, %v750, %v769
      %v825 = vsel %vm362, %v744, %v766
      %s826 = scalar_lea.vmem %s1, 8
      %v827 = vld [vmem:[%s826] sm:$0xf]
      %836 = vrot.lane.b32.xlu0 %v810, 84
      %v837 = vpop.permute.xlu0 %836
      %838 = vrot.lane.b32.xlu0 %v811, 84
      %v839 = vpop.permute.xlu0 %838
      %840 = vrot.lane.b32.xlu0 %v812, 84
      %v841 = vpop.permute.xlu0 %840
      %842 = vrot.lane.b32.xlu0 %v813, 84
      %v843 = vpop.permute.xlu0 %842
      %844 = vrot.lane.b32.xlu0 %v816, 84
      %v845 = vpop.permute.xlu0 %844
      %846 = vrot.lane.b32.xlu0 %v819, 84
      %v847 = vpop.permute.xlu0 %846
      %848 = vrot.lane.b32.xlu0 %v822, 84
      %v849 = vpop.permute.xlu0 %848
      %850 = vrot.lane.b32.xlu0 %v825, 84
      %v851 = vpop.permute.xlu0 %850
      %vm852 = vcmask 687104
      %v853 = vsel %vm852, %v837, %v839
      %v854 = vsel %vm852, %v839, %v841
      %v855 = vsel %vm852, %v841, %v843
      %v856 = vsel %vm852, %v845, %v847
      %v857 = vsel %vm852, %v847, %v849
      %v858 = vsel %vm852, %v849, %v851
      %v863 = vsel %vm401, %v827, 0
      %v866 = vand.u32 %v856, %v407
      %v869 = vand.u32 %v857, %v407
      %v872 = vand.u32 %v858, %v407
      %874 = vmatprep.subr.bf16.mxu0 %v854
      %875 = vmatpush1.bf16.msra.mxu0 %v853
      %876 = vmatprep.subr.bf16.mxu0 %v869
      %877 = vmatpush1.bf16.msra.mxu0 %v866
      %878 = vmatprep.subr.bf16.mxu0 0
      %879 = vmatpush1.bf16.msra.mxu0 0
      %880 = vmatprep.subr.bf16.mxu0 0
      %881 = vmatpush1.bf16.msra.mxu0 0
      %882 = vmatprep.subr.bf16.mxu0 0
      %883 = vmatpush1.bf16.msra.mxu0 0
      %884 = vmatprep.subr.bf16.mxu0 0
      %885 = vmatpush1.bf16.msra.mxu0 0
      %886 = vmatprep.subr.bf16.mxu0 0
      %887 = vmatpush1.bf16.msra.mxu0 0
      %888 = vmatprep.subr.bf16.mxu0 0
      %889 = vmatpush1.bf16.msra.mxu0 0
      %890 = vmatprep.subr.bf16.mxu0 0
      %891 = vmatpush1.bf16.msra.mxu0 0
      %892 = vmatprep.subr.bf16.mxu0 0
      %893 = vmatpush1.bf16.msra.mxu0 0
      %894 = vmatprep.subr.bf16.mxu0 0
      %895 = vmatpush1.bf16.msra.mxu0 0
      %896 = vmatprep.subr.bf16.mxu0 0
      %897 = vmatpush1.bf16.msra.mxu0 0
      %898 = vmatprep.subr.bf16.mxu0 0
      %899 = vmatpush1.bf16.msra.mxu0 0
      %900 = vmatprep.subr.bf16.mxu0 0
      %901 = vmatpush1.bf16.msra.mxu0 0
      %902 = vmatprep.subr.bf16.mxu0 0
      %903 = vmatpush1.bf16.msra.mxu0 0
      %904 = vmatprep.subr.bf16.mxu0 0
      %905 = vmatpush1.bf16.msra.mxu0 0
      %906 = vmatprep.mubr.bf16.mxu0 0
      %907 = vmatmul.mubr.bf16.gmra.mrb[0].mxu0 %v863
      %v908 = vpop.f32.mrb[0].mxu0
      %v909 = vadd.f32 0.0, %v908
      %v910 = vpop.f32.mrb[0].mxu0
      %v911 = vadd.f32 0.0, %v910
      %v912 = vpop.f32.mrb[0].mxu0
      %v913 = vpop.f32.mrb[0].mxu0
      %914 = vdwg.mxu0
      %915 = vmatprep.subr.bf16.mxu0 0
      %916 = vmatpush1.bf16.msra.mxu0 %v855
      %917 = vmatprep.subr.bf16.mxu0 0
      %918 = vmatpush1.bf16.msra.mxu0 %v872
      %919 = vmatprep.subr.bf16.mxu0 0
      %920 = vmatpush1.bf16.msra.mxu0 0
      %921 = vmatprep.subr.bf16.mxu0 0
      %922 = vmatpush1.bf16.msra.mxu0 0
      %923 = vmatprep.subr.bf16.mxu0 0
      %924 = vmatpush1.bf16.msra.mxu0 0
      %925 = vmatprep.subr.bf16.mxu0 0
      %926 = vmatpush1.bf16.msra.mxu0 0
      %927 = vmatprep.subr.bf16.mxu0 0
      %928 = vmatpush1.bf16.msra.mxu0 0
      %929 = vmatprep.subr.bf16.mxu0 0
      %930 = vmatpush1.bf16.msra.mxu0 0
      %931 = vmatprep.subr.bf16.mxu0 0
      %932 = vmatpush1.bf16.msra.mxu0 0
      %933 = vmatprep.subr.bf16.mxu0 0
      %934 = vmatpush1.bf16.msra.mxu0 0
      %935 = vmatprep.subr.bf16.mxu0 0
      %936 = vmatpush1.bf16.msra.mxu0 0
      %937 = vmatprep.subr.bf16.mxu0 0
      %938 = vmatpush1.bf16.msra.mxu0 0
      %939 = vmatprep.subr.bf16.mxu0 0
      %940 = vmatpush1.bf16.msra.mxu0 0
      %941 = vmatprep.subr.bf16.mxu0 0
      %942 = vmatpush1.bf16.msra.mxu0 0
      %943 = vmatprep.subr.bf16.mxu0 0
      %944 = vmatpush1.bf16.msra.mxu0 0
      %945 = vmatprep.subr.bf16.mxu0 0
      %946 = vmatpush1.bf16.msra.mxu0 0
      %947 = vmatprep.mubr.bf16.mxu0 0
      %948 = vmatmul.mubr.bf16.gmra.mrb[0].mxu0 %v863
      %v949 = vpop.f32.mrb[0].mxu0
      %v950 = vadd.f32 0.0, %v949
      %v951 = vpop.f32.mrb[0].mxu0
      %v952 = vpop.f32.mrb[0].mxu0
      %v953 = vpop.f32.mrb[0].mxu0
      %954 = vdwg.mxu0
      %v955 = vadd.f32 %v542, %v909
      %v956 = vadd.f32 %v544, %v911
      %v957 = vadd.f32 %v583, %v950
      %v958 = vld [vmem:[%s164] sm:$0xff]
      %v960 = vcombine.high %v958, %v958
      %v962 = vunpack.c.l.s4 1983009808
      %v963 = vunpack.c.0.s8 %v962
      %v964 = vlaneseq
      %v965 = vshrl.u32 %v964, 7
      %v966 = vsub.s32 %v963, %v965
      %v967 = vrot.slane %v958, %v966
      %v969 = vunpack.c.l.s4 1983009808
      %v970 = vunpack.c.0.s8 %v969
      %v971 = vlaneseq
      %v972 = vshrl.u32 %v971, 7
      %v973 = vsub.s32 %v970, %v972
      %v974 = vrot.slane %v960, %v973
      %v975 = vcombine.high %v967, %v967
      %v976 = vcombine.high %v974, %v974
      %v982 = vshrl.u32 %v967, 16
      %v984 = vrot.slane %v982, 6
      %v985 = vshll.u32 %v967, 16
      %v987 = vrot.slane %v985, 7
      %v988 = vor.u32 %v984, %v987
      %v990 = vshrl.u32 %v975, 16
      %v992 = vrot.slane %v990, 6
      %v993 = vshll.u32 %v975, 16
      %v995 = vrot.slane %v993, 7
      %v996 = vor.u32 %v992, %v995
      %v998 = vshrl.u32 %v974, 16
      %v1000 = vrot.slane %v998, 6
      %v1001 = vshll.u32 %v974, 16
      %v1003 = vrot.slane %v1001, 7
      %v1004 = vor.u32 %v1000, %v1003
      %v1006 = vshrl.u32 %v976, 16
      %v1008 = vrot.slane %v1006, 6
      %v1009 = vshll.u32 %v976, 16
      %v1011 = vrot.slane %v1009, 7
      %v1012 = vor.u32 %v1008, %v1011
      %1013 = vrot.lane.b32.xlu0 %v988, 127
      %v1014 = vpop.permute.xlu0 %1013
      %1015 = vrot.lane.b32.xlu0 %v996, 127
      %v1016 = vpop.permute.xlu0 %1015
      %1017 = vrot.lane.b32.xlu0 %v1004, 127
      %v1018 = vpop.permute.xlu0 %1017
      %1019 = vrot.lane.b32.xlu0 %v1012, 127
      %v1020 = vpop.permute.xlu0 %1019
      %v1021 = vsel %vm222, %v1014, %v1016
      %v1022 = vsel %vm222, %v1016, %v1018
      %v1023 = vsel %vm222, %v1018, %v1020
      %v1028 = vrot.slane %v967, 5
      %v1029 = vrot.slane %v975, 5
      %v1030 = vrot.slane %v974, 5
      %v1031 = vrot.slane %v976, 5
      %1032 = vrot.lane.b32.xlu0 %v1028, 126
      %v1033 = vpop.permute.xlu0 %1032
      %1034 = vrot.lane.b32.xlu0 %v1029, 126
      %v1035 = vpop.permute.xlu0 %1034
      %1036 = vrot.lane.b32.xlu0 %v1030, 126
      %v1037 = vpop.permute.xlu0 %1036
      %1038 = vrot.lane.b32.xlu0 %v1031, 126
      %v1039 = vpop.permute.xlu0 %1038
      %v1040 = vsel %vm237, %v1033, %v1035
      %v1041 = vsel %vm237, %v1035, %v1037
      %v1042 = vsel %vm237, %v1037, %v1039
      %v1043 = vrot.slane %v982, 3
      %v1044 = vrot.slane %v985, 4
      %v1045 = vor.u32 %v1043, %v1044
      %v1046 = vrot.slane %v990, 3
      %v1047 = vrot.slane %v993, 4
      %v1048 = vor.u32 %v1046, %v1047
      %v1049 = vrot.slane %v998, 3
      %v1050 = vrot.slane %v1001, 4
      %v1051 = vor.u32 %v1049, %v1050
      %v1052 = vrot.slane %v1006, 3
      %v1053 = vrot.slane %v1009, 4
      %v1054 = vor.u32 %v1052, %v1053
      %1055 = vrot.lane.b32.xlu0 %v1045, 125
      %v1056 = vpop.permute.xlu0 %1055
      %1057 = vrot.lane.b32.xlu0 %v1048, 125
      %v1058 = vpop.permute.xlu0 %1057
      %1059 = vrot.lane.b32.xlu0 %v1051, 125
      %v1060 = vpop.permute.xlu0 %1059
      %1061 = vrot.lane.b32.xlu0 %v1054, 125
      %v1062 = vpop.permute.xlu0 %1061
      %v1063 = vsel %vm255, %v1056, %v1058
      %v1064 = vsel %vm255, %v1058, %v1060
      %v1065 = vsel %vm255, %v1060, %v1062
      %v1070 = vcombine.low %v958, %v958
      %v1072 = vunpack.c.l.s4 1983009808
      %v1073 = vunpack.c.0.s8 %v1072
      %v1074 = vlaneseq
      %v1075 = vshrl.u32 %v1074, 7
      %v1076 = vsub.s32 %v1073, %v1075
      %v1077 = vrot.slane %v1070, %v1076
      %v1078 = vcombine.low %v1077, %v1077
      %v1079 = vcombine.low %v967, %v967
      %1080 = vrot.lane.b32.xlu0 %v1078, 124
      %v1081 = vpop.permute.xlu0 %1080
      %1082 = vrot.lane.b32.xlu0 %v1077, 124
      %v1083 = vpop.permute.xlu0 %1082
      %1084 = vrot.lane.b32.xlu0 %v1079, 124
      %v1085 = vpop.permute.xlu0 %1084
      %1086 = vrot.lane.b32.xlu0 %v967, 124
      %v1087 = vpop.permute.xlu0 %1086
      %v1088 = vsel %vm277, %v1081, %v1083
      %v1089 = vsel %vm277, %v1083, %v1085
      %v1090 = vsel %vm277, %v1085, %v1087
      %v1091 = vrot.slane %v985, 1
      %v1092 = vrot.slane %v993, 1
      %v1093 = vrot.slane %v1001, 1
      %v1094 = vrot.slane %v1009, 1
      %v1095 = vor.u32 %v982, %v1091
      %v1096 = vor.u32 %v990, %v1092
      %v1097 = vor.u32 %v998, %v1093
      %v1098 = vor.u32 %v1006, %v1094
      %1099 = vrot.lane.b32.xlu0 %v1091, 123
      %v1100 = vpop.permute.xlu0 %1099
      %1101 = vrot.lane.b32.xlu0 %v1092, 123
      %v1102 = vpop.permute.xlu0 %1101
      %1103 = vrot.lane.b32.xlu0 %v1093, 123
      %v1104 = vpop.permute.xlu0 %1103
      %1105 = vrot.lane.b32.xlu0 %v1094, 123
      %v1106 = vpop.permute.xlu0 %1105
      %1107 = vrot.lane.b32.xlu0 %v1095, 123
      %v1108 = vpop.permute.xlu0 %1107
      %1109 = vrot.lane.b32.xlu0 %v1096, 123
      %v1110 = vpop.permute.xlu0 %1109
      %1111 = vrot.lane.b32.xlu0 %v1097, 123
      %v1112 = vpop.permute.xlu0 %1111
      %1113 = vrot.lane.b32.xlu0 %v1098, 123
      %v1114 = vpop.permute.xlu0 %1113
      %v1115 = vsel %vm298, %v1100, %v1102
      %v1116 = vsel %vm298, %v1102, %v1104
      %v1117 = vsel %vm298, %v1104, %v1106
      %v1118 = vsel %vm298, %v1108, %v1110
      %v1119 = vsel %vm298, %v1110, %v1112
      %v1120 = vsel %vm298, %v1112, %v1114
      %v1125 = vrot.slane %v967, 7
      %v1126 = vrot.slane %v975, 7
      %v1127 = vrot.slane %v974, 7
      %v1128 = vrot.slane %v976, 7
      %1129 = vrot.lane.b32.xlu0 %v1125, 122
      %v1130 = vpop.permute.xlu0 %1129
      %1131 = vrot.lane.b32.xlu0 %v1126, 122
      %v1132 = vpop.permute.xlu0 %1131
      %1133 = vrot.lane.b32.xlu0 %v1127, 122
      %v1134 = vpop.permute.xlu0 %1133
      %1135 = vrot.lane.b32.xlu0 %v1128, 122
      %v1136 = vpop.permute.xlu0 %1135
      %v1137 = vsel %vm315, %v1130, %v1132
      %v1138 = vsel %vm315, %v1132, %v1134
      %v1139 = vsel %vm315, %v1134, %v1136
      %v1140 = vsel %vm320, %v967, %v1021
      %v1141 = vsel %vm320, %v975, %v1022
      %v1142 = vsel %vm320, %v974, %v1023
      %v1143 = vsel %vm320, %v976, %v1020
      %v1146 = vsel %vm324, %v1140, %v1040
      %v1150 = vsel %vm324, %v1141, %v1041
      %v1154 = vsel %vm324, %v1142, %v1042
      %v1158 = vsel %vm324, %v1143, %v1039
      %v1160 = vsel %vm339, %v1146, %v1063
      %v1161 = vsel %vm339, %v1150, %v1064
      %v1162 = vsel %vm339, %v1154, %v1065
      %v1163 = vsel %vm339, %v1158, %v1062
      %v1166 = vsel %vm343, %v1160, %v1088
      %v1170 = vsel %vm343, %v1161, %v1089
      %v1174 = vsel %vm343, %v1162, %v1090
      %v1178 = vsel %vm343, %v1163, %v1087
      %v1180 = vsel %vm358, %v1166, %v1115
      %v1181 = vsel %vm358, %v1170, %v1116
      %v1182 = vsel %vm358, %v1174, %v1117
      %v1183 = vsel %vm358, %v1178, %v1106
      %v1186 = vsel %vm362, %v1118, %v1137
      %v1189 = vsel %vm362, %v1119, %v1138
      %v1192 = vsel %vm362, %v1120, %v1139
      %v1195 = vsel %vm362, %v1114, %v1136
      %s1196 = scalar_lea.vmem %s1, 12
      %v1197 = vld [vmem:[%s1196] sm:$0xf]
      %1206 = vrot.lane.b32.xlu0 %v1180, 62
      %v1207 = vpop.permute.xlu0 %1206
      %1208 = vrot.lane.b32.xlu0 %v1181, 62
      %v1209 = vpop.permute.xlu0 %1208
      %1210 = vrot.lane.b32.xlu0 %v1182, 62
      %v1211 = vpop.permute.xlu0 %1210
      %1212 = vrot.lane.b32.xlu0 %v1183, 62
      %v1213 = vpop.permute.xlu0 %1212
      %1214 = vrot.lane.b32.xlu0 %v1186, 62
      %v1215 = vpop.permute.xlu0 %1214
      %1216 = vrot.lane.b32.xlu0 %v1189, 62
      %v1217 = vpop.permute.xlu0 %1216
      %1218 = vrot.lane.b32.xlu0 %v1192, 62
      %v1219 = vpop.permute.xlu0 %1218
      %1220 = vrot.lane.b32.xlu0 %v1195, 62
      %v1221 = vpop.permute.xlu0 %1220
      %vm1222 = vcmask 506880
      %v1223 = vsel %vm1222, %v1207, %v1209
      %v1224 = vsel %vm1222, %v1209, %v1211
      %v1225 = vsel %vm1222, %v1211, %v1213
      %v1226 = vsel %vm1222, %v1215, %v1217
      %v1227 = vsel %vm1222, %v1217, %v1219
      %v1228 = vsel %vm1222, %v1219, %v1221
      %v1233 = vsel %vm401, %v1197, 0
      %v1236 = vand.u32 %v1226, %v407
      %v1239 = vand.u32 %v1227, %v407
      %v1242 = vand.u32 %v1228, %v407
      %1244 = vmatprep.subr.bf16.mxu0 %v1224
      %1245 = vmatpush1.bf16.msra.mxu0 %v1223
      %1246 = vmatprep.subr.bf16.mxu0 %v1239
      %1247 = vmatpush1.bf16.msra.mxu0 %v1236
      %1248 = vmatprep.subr.bf16.mxu0 0
      %1249 = vmatpush1.bf16.msra.mxu0 0
      %1250 = vmatprep.subr.bf16.mxu0 0
      %1251 = vmatpush1.bf16.msra.mxu0 0
      %1252 = vmatprep.subr.bf16.mxu0 0
      %1253 = vmatpush1.bf16.msra.mxu0 0
      %1254 = vmatprep.subr.bf16.mxu0 0
      %1255 = vmatpush1.bf16.msra.mxu0 0
      %1256 = vmatprep.subr.bf16.mxu0 0
      %1257 = vmatpush1.bf16.msra.mxu0 0
      %1258 = vmatprep.subr.bf16.mxu0 0
      %1259 = vmatpush1.bf16.msra.mxu0 0
      %1260 = vmatprep.subr.bf16.mxu0 0
      %1261 = vmatpush1.bf16.msra.mxu0 0
      %1262 = vmatprep.subr.bf16.mxu0 0
      %1263 = vmatpush1.bf16.msra.mxu0 0
      %1264 = vmatprep.subr.bf16.mxu0 0
      %1265 = vmatpush1.bf16.msra.mxu0 0
      %1266 = vmatprep.subr.bf16.mxu0 0
      %1267 = vmatpush1.bf16.msra.mxu0 0
      %1268 = vmatprep.subr.bf16.mxu0 0
      %1269 = vmatpush1.bf16.msra.mxu0 0
      %1270 = vmatprep.subr.bf16.mxu0 0
      %1271 = vmatpush1.bf16.msra.mxu0 0
      %1272 = vmatprep.subr.bf16.mxu0 0
      %1273 = vmatpush1.bf16.msra.mxu0 0
      %1274 = vmatprep.subr.bf16.mxu0 0
      %1275 = vmatpush1.bf16.msra.mxu0 0
      %1276 = vmatprep.mubr.bf16.mxu0 0
      %1277 = vmatmul.mubr.bf16.gmra.mrb[0].mxu0 %v1233
      %v1278 = vpop.f32.mrb[0].mxu0
      %v1279 = vadd.f32 0.0, %v1278
      %v1280 = vpop.f32.mrb[0].mxu0
      %v1281 = vadd.f32 0.0, %v1280
      %v1282 = vpop.f32.mrb[0].mxu0
      %v1283 = vpop.f32.mrb[0].mxu0
      %1284 = vdwg.mxu0
      %1285 = vmatprep.subr.bf16.mxu0 0
      %1286 = vmatpush1.bf16.msra.mxu0 %v1225
      %1287 = vmatprep.subr.bf16.mxu0 0
      %1288 = vmatpush1.bf16.msra.mxu0 %v1242
      %1289 = vmatprep.subr.bf16.mxu0 0
      %1290 = vmatpush1.bf16.msra.mxu0 0
      %1291 = vmatprep.subr.bf16.mxu0 0
      %1292 = vmatpush1.bf16.msra.mxu0 0
      %1293 = vmatprep.subr.bf16.mxu0 0
      %1294 = vmatpush1.bf16.msra.mxu0 0
      %1295 = vmatprep.subr.bf16.mxu0 0
      %1296 = vmatpush1.bf16.msra.mxu0 0
      %1297 = vmatprep.subr.bf16.mxu0 0
      %1298 = vmatpush1.bf16.msra.mxu0 0
      %1299 = vmatprep.subr.bf16.mxu0 0
      %1300 = vmatpush1.bf16.msra.mxu0 0
      %1301 = vmatprep.subr.bf16.mxu0 0
      %1302 = vmatpush1.bf16.msra.mxu0 0
      %1303 = vmatprep.subr.bf16.mxu0 0
      %1304 = vmatpush1.bf16.msra.mxu0 0
      %1305 = vmatprep.subr.bf16.mxu0 0
      %1306 = vmatpush1.bf16.msra.mxu0 0
      %1307 = vmatprep.subr.bf16.mxu0 0
      %1308 = vmatpush1.bf16.msra.mxu0 0
      %1309 = vmatprep.subr.bf16.mxu0 0
      %1310 = vmatpush1.bf16.msra.mxu0 0
      %1311 = vmatprep.subr.bf16.mxu0 0
      %1312 = vmatpush1.bf16.msra.mxu0 0
      %1313 = vmatprep.subr.bf16.mxu0 0
      %1314 = vmatpush1.bf16.msra.mxu0 0
      %1315 = vmatprep.subr.bf16.mxu0 0
      %1316 = vmatpush1.bf16.msra.mxu0 0
      %1317 = vmatprep.mubr.bf16.mxu0 0
      %1318 = vmatmul.mubr.bf16.gmra.mrb[0].mxu0 %v1233
      %v1319 = vpop.f32.mrb[0].mxu0
      %v1320 = vadd.f32 0.0, %v1319
      %v1321 = vpop.f32.mrb[0].mxu0
      %v1322 = vpop.f32.mrb[0].mxu0
      %v1323 = vpop.f32.mrb[0].mxu0
      %1324 = vdwg.mxu0
      %v1325 = vadd.f32 %v955, %v1279
      %v1326 = vadd.f32 %v956, %v1281
      %v1327 = vadd.f32 %v957, %v1320
      %v1328 = vld [vmem:[%s164] sm:$0xff]
      %v1330 = vcombine.high %v1328, %v1328
      %v1332 = vunpack.c.l.s4 1983009808
      %v1333 = vunpack.c.0.s8 %v1332
      %v1334 = vlaneseq
      %v1335 = vshrl.u32 %v1334, 7
      %v1336 = vsub.s32 %v1333, %v1335
      %v1337 = vrot.slane %v1328, %v1336
      %v1339 = vunpack.c.l.s4 1983009808
      %v1340 = vunpack.c.0.s8 %v1339
      %v1341 = vlaneseq
      %v1342 = vshrl.u32 %v1341, 7
      %v1343 = vsub.s32 %v1340, %v1342
      %v1344 = vrot.slane %v1330, %v1343
      %v1345 = vcombine.high %v1337, %v1337
      %v1346 = vcombine.high %v1344, %v1344
      %v1352 = vshrl.u32 %v1337, 16
      %v1354 = vrot.slane %v1352, 6
      %v1355 = vshll.u32 %v1337, 16
      %v1357 = vrot.slane %v1355, 7
      %v1358 = vor.u32 %v1354, %v1357
      %v1360 = vshrl.u32 %v1345, 16
      %v1362 = vrot.slane %v1360, 6
      %v1363 = vshll.u32 %v1345, 16
      %v1365 = vrot.slane %v1363, 7
      %v1366 = vor.u32 %v1362, %v1365
      %v1368 = vshrl.u32 %v1344, 16
      %v1370 = vrot.slane %v1368, 6
      %v1371 = vshll.u32 %v1344, 16
      %v1373 = vrot.slane %v1371, 7
      %v1374 = vor.u32 %v1370, %v1373
      %v1376 = vshrl.u32 %v1346, 16
      %v1378 = vrot.slane %v1376, 6
      %v1379 = vshll.u32 %v1346, 16
      %v1381 = vrot.slane %v1379, 7
      %v1382 = vor.u32 %v1378, %v1381
      %1383 = vrot.lane.b32.xlu0 %v1358, 127
      %v1384 = vpop.permute.xlu0 %1383
      %1385 = vrot.lane.b32.xlu0 %v1366, 127
      %v1386 = vpop.permute.xlu0 %1385
      %1387 = vrot.lane.b32.xlu0 %v1374, 127
      %v1388 = vpop.permute.xlu0 %1387
      %1389 = vrot.lane.b32.xlu0 %v1382, 127
      %v1390 = vpop.permute.xlu0 %1389
      %v1391 = vsel %vm222, %v1384, %v1386
      %v1392 = vsel %vm222, %v1386, %v1388
      %v1393 = vsel %vm222, %v1388, %v1390
      %v1398 = vrot.slane %v1337, 5
      %v1399 = vrot.slane %v1345, 5
      %v1400 = vrot.slane %v1344, 5
      %v1401 = vrot.slane %v1346, 5
      %1402 = vrot.lane.b32.xlu0 %v1398, 126
      %v1403 = vpop.permute.xlu0 %1402
      %1404 = vrot.lane.b32.xlu0 %v1399, 126
      %v1405 = vpop.permute.xlu0 %1404
      %1406 = vrot.lane.b32.xlu0 %v1400, 126
      %v1407 = vpop.permute.xlu0 %1406
      %1408 = vrot.lane.b32.xlu0 %v1401, 126
      %v1409 = vpop.permute.xlu0 %1408
      %v1410 = vsel %vm237, %v1403, %v1405
      %v1411 = vsel %vm237, %v1405, %v1407
      %v1412 = vsel %vm237, %v1407, %v1409
      %v1413 = vrot.slane %v1352, 3
      %v1414 = vrot.slane %v1355, 4
      %v1415 = vor.u32 %v1413, %v1414
      %v1416 = vrot.slane %v1360, 3
      %v1417 = vrot.slane %v1363, 4
      %v1418 = vor.u32 %v1416, %v1417
      %v1419 = vrot.slane %v1368, 3
      %v1420 = vrot.slane %v1371, 4
      %v1421 = vor.u32 %v1419, %v1420
      %v1422 = vrot.slane %v1376, 3
      %v1423 = vrot.slane %v1379, 4
      %v1424 = vor.u32 %v1422, %v1423
      %1425 = vrot.lane.b32.xlu0 %v1415, 125
      %v1426 = vpop.permute.xlu0 %1425
      %1427 = vrot.lane.b32.xlu0 %v1418, 125
      %v1428 = vpop.permute.xlu0 %1427
      %1429 = vrot.lane.b32.xlu0 %v1421, 125
      %v1430 = vpop.permute.xlu0 %1429
      %1431 = vrot.lane.b32.xlu0 %v1424, 125
      %v1432 = vpop.permute.xlu0 %1431
      %v1433 = vsel %vm255, %v1426, %v1428
      %v1434 = vsel %vm255, %v1428, %v1430
      %v1435 = vsel %vm255, %v1430, %v1432
      %v1440 = vcombine.low %v1328, %v1328
      %v1442 = vunpack.c.l.s4 1983009808
      %v1443 = vunpack.c.0.s8 %v1442
      %v1444 = vlaneseq
      %v1445 = vshrl.u32 %v1444, 7
      %v1446 = vsub.s32 %v1443, %v1445
      %v1447 = vrot.slane %v1440, %v1446
      %v1448 = vcombine.low %v1447, %v1447
      %v1449 = vcombine.low %v1337, %v1337
      %1450 = vrot.lane.b32.xlu0 %v1448, 124
      %v1451 = vpop.permute.xlu0 %1450
      %1452 = vrot.lane.b32.xlu0 %v1447, 124
      %v1453 = vpop.permute.xlu0 %1452
      %1454 = vrot.lane.b32.xlu0 %v1449, 124
      %v1455 = vpop.permute.xlu0 %1454
      %1456 = vrot.lane.b32.xlu0 %v1337, 124
      %v1457 = vpop.permute.xlu0 %1456
      %v1458 = vsel %vm277, %v1451, %v1453
      %v1459 = vsel %vm277, %v1453, %v1455
      %v1460 = vsel %vm277, %v1455, %v1457
      %v1461 = vrot.slane %v1355, 1
      %v1462 = vrot.slane %v1363, 1
      %v1463 = vrot.slane %v1371, 1
      %v1464 = vrot.slane %v1379, 1
      %v1465 = vor.u32 %v1352, %v1461
      %v1466 = vor.u32 %v1360, %v1462
      %v1467 = vor.u32 %v1368, %v1463
      %v1468 = vor.u32 %v1376, %v1464
      %1469 = vrot.lane.b32.xlu0 %v1461, 123
      %v1470 = vpop.permute.xlu0 %1469
      %1471 = vrot.lane.b32.xlu0 %v1462, 123
      %v1472 = vpop.permute.xlu0 %1471
      %1473 = vrot.lane.b32.xlu0 %v1463, 123
      %v1474 = vpop.permute.xlu0 %1473
      %1475 = vrot.lane.b32.xlu0 %v1464, 123
      %v1476 = vpop.permute.xlu0 %1475
      %1477 = vrot.lane.b32.xlu0 %v1465, 123
      %v1478 = vpop.permute.xlu0 %1477
      %1479 = vrot.lane.b32.xlu0 %v1466, 123
      %v1480 = vpop.permute.xlu0 %1479
      %1481 = vrot.lane.b32.xlu0 %v1467, 123
      %v1482 = vpop.permute.xlu0 %1481
      %1483 = vrot.lane.b32.xlu0 %v1468, 123
      %v1484 = vpop.permute.xlu0 %1483
      %v1485 = vsel %vm298, %v1470, %v1472
      %v1486 = vsel %vm298, %v1472, %v1474
      %v1487 = vsel %vm298, %v1474, %v1476
      %v1488 = vsel %vm298, %v1478, %v1480
      %v1489 = vsel %vm298, %v1480, %v1482
      %v1490 = vsel %vm298, %v1482, %v1484
      %v1495 = vrot.slane %v1337, 7
      %v1496 = vrot.slane %v1345, 7
      %v1497 = vrot.slane %v1344, 7
      %v1498 = vrot.slane %v1346, 7
      %1499 = vrot.lane.b32.xlu0 %v1495, 122
      %v1500 = vpop.permute.xlu0 %1499
      %1501 = vrot.lane.b32.xlu0 %v1496, 122
      %v1502 = vpop.permute.xlu0 %1501
      %1503 = vrot.lane.b32.xlu0 %v1497, 122
      %v1504 = vpop.permute.xlu0 %1503
      %1505 = vrot.lane.b32.xlu0 %v1498, 122
      %v1506 = vpop.permute.xlu0 %1505
      %v1507 = vsel %vm315, %v1500, %v1502
      %v1508 = vsel %vm315, %v1502, %v1504
      %v1509 = vsel %vm315, %v1504, %v1506
      %v1510 = vsel %vm320, %v1337, %v1391
      %v1511 = vsel %vm320, %v1345, %v1392
      %v1512 = vsel %vm320, %v1344, %v1393
      %v1513 = vsel %vm320, %v1346, %v1390
      %v1516 = vsel %vm324, %v1510, %v1410
      %v1520 = vsel %vm324, %v1511, %v1411
      %v1524 = vsel %vm324, %v1512, %v1412
      %v1528 = vsel %vm324, %v1513, %v1409
      %v1530 = vsel %vm339, %v1516, %v1433
      %v1531 = vsel %vm339, %v1520, %v1434
      %v1532 = vsel %vm339, %v1524, %v1435
      %v1533 = vsel %vm339, %v1528, %v1432
      %v1536 = vsel %vm343, %v1530, %v1458
      %v1540 = vsel %vm343, %v1531, %v1459
      %v1544 = vsel %vm343, %v1532, %v1460
      %v1548 = vsel %vm343, %v1533, %v1457
      %v1550 = vsel %vm358, %v1536, %v1485
      %v1551 = vsel %vm358, %v1540, %v1486
      %v1552 = vsel %vm358, %v1544, %v1487
      %v1553 = vsel %vm358, %v1548, %v1476
      %v1556 = vsel %vm362, %v1488, %v1507
      %v1559 = vsel %vm362, %v1489, %v1508
      %v1562 = vsel %vm362, %v1490, %v1509
      %v1565 = vsel %vm362, %v1484, %v1506
      %s1566 = scalar_lea.vmem %s1, 16
      %v1567 = vld [vmem:[%s1566] sm:$0xf]
      %1576 = vrot.lane.b32.xlu0 %v1550, 40
      %v1577 = vpop.permute.xlu0 %1576
      %1578 = vrot.lane.b32.xlu0 %v1551, 40
      %v1579 = vpop.permute.xlu0 %1578
      %1580 = vrot.lane.b32.xlu0 %v1552, 40
      %v1581 = vpop.permute.xlu0 %1580
      %1582 = vrot.lane.b32.xlu0 %v1553, 40
      %v1583 = vpop.permute.xlu0 %1582
      %1584 = vrot.lane.b32.xlu0 %v1556, 40
      %v1585 = vpop.permute.xlu0 %1584
      %1586 = vrot.lane.b32.xlu0 %v1559, 40
      %v1587 = vpop.permute.xlu0 %1586
      %1588 = vrot.lane.b32.xlu0 %v1562, 40
      %v1589 = vpop.permute.xlu0 %1588
      %1590 = vrot.lane.b32.xlu0 %v1565, 40
      %v1591 = vpop.permute.xlu0 %1590
      %vm1592 = vcmask 326656
      %v1593 = vsel %vm1592, %v1577, %v1579
      %v1594 = vsel %vm1592, %v1579, %v1581
      %v1595 = vsel %vm1592, %v1581, %v1583
      %v1596 = vsel %vm1592, %v1585, %v1587
      %v1597 = vsel %vm1592, %v1587, %v1589
      %v1598 = vsel %vm1592, %v1589, %v1591
      %v1603 = vsel %vm401, %v1567, 0
      %v1606 = vand.u32 %v1596, %v407
      %v1609 = vand.u32 %v1597, %v407
      %v1612 = vand.u32 %v1598, %v407
      %1614 = vmatprep.subr.bf16.mxu0 %v1594
      %1615 = vmatpush1.bf16.msra.mxu0 %v1593
      %1616 = vmatprep.subr.bf16.mxu0 %v1609
      %1617 = vmatpush1.bf16.msra.mxu0 %v1606
      %1618 = vmatprep.subr.bf16.mxu0 0
      %1619 = vmatpush1.bf16.msra.mxu0 0
      %1620 = vmatprep.subr.bf16.mxu0 0
      %1621 = vmatpush1.bf16.msra.mxu0 0
      %1622 = vmatprep.subr.bf16.mxu0 0
      %1623 = vmatpush1.bf16.msra.mxu0 0
      %1624 = vmatprep.subr.bf16.mxu0 0
      %1625 = vmatpush1.bf16.msra.mxu0 0
      %1626 = vmatprep.subr.bf16.mxu0 0
      %1627 = vmatpush1.bf16.msra.mxu0 0
      %1628 = vmatprep.subr.bf16.mxu0 0
      %1629 = vmatpush1.bf16.msra.mxu0 0
      %1630 = vmatprep.subr.bf16.mxu0 0
      %1631 = vmatpush1.bf16.msra.mxu0 0
      %1632 = vmatprep.subr.bf16.mxu0 0
      %1633 = vmatpush1.bf16.msra.mxu0 0
      %1634 = vmatprep.subr.bf16.mxu0 0
      %1635 = vmatpush1.bf16.msra.mxu0 0
      %1636 = vmatprep.subr.bf16.mxu0 0
      %1637 = vmatpush1.bf16.msra.mxu0 0
      %1638 = vmatprep.subr.bf16.mxu0 0
      %1639 = vmatpush1.bf16.msra.mxu0 0
      %1640 = vmatprep.subr.bf16.mxu0 0
      %1641 = vmatpush1.bf16.msra.mxu0 0
      %1642 = vmatprep.subr.bf16.mxu0 0
      %1643 = vmatpush1.bf16.msra.mxu0 0
      %1644 = vmatprep.subr.bf16.mxu0 0
      %1645 = vmatpush1.bf16.msra.mxu0 0
      %1646 = vmatprep.mubr.bf16.mxu0 0
      %1647 = vmatmul.mubr.bf16.gmra.mrb[0].mxu0 %v1603
      %v1648 = vpop.f32.mrb[0].mxu0
      %v1649 = vadd.f32 0.0, %v1648
      %v1650 = vpop.f32.mrb[0].mxu0
      %v1651 = vadd.f32 0.0, %v1650
      %v1652 = vpop.f32.mrb[0].mxu0
      %v1653 = vpop.f32.mrb[0].mxu0
      %1654 = vdwg.mxu0
      %1655 = vmatprep.subr.bf16.mxu0 0
      %1656 = vmatpush1.bf16.msra.mxu0 %v1595
      %1657 = vmatprep.subr.bf16.mxu0 0
      %1658 = vmatpush1.bf16.msra.mxu0 %v1612
      %1659 = vmatprep.subr.bf16.mxu0 0
      %1660 = vmatpush1.bf16.msra.mxu0 0
      %1661 = vmatprep.subr.bf16.mxu0 0
      %1662 = vmatpush1.bf16.msra.mxu0 0
      %1663 = vmatprep.subr.bf16.mxu0 0
      %1664 = vmatpush1.bf16.msra.mxu0 0
      %1665 = vmatprep.subr.bf16.mxu0 0
      %1666 = vmatpush1.bf16.msra.mxu0 0
      %1667 = vmatprep.subr.bf16.mxu0 0
      %1668 = vmatpush1.bf16.msra.mxu0 0
      %1669 = vmatprep.subr.bf16.mxu0 0
      %1670 = vmatpush1.bf16.msra.mxu0 0
      %1671 = vmatprep.subr.bf16.mxu0 0
      %1672 = vmatpush1.bf16.msra.mxu0 0
      %1673 = vmatprep.subr.bf16.mxu0 0
      %1674 = vmatpush1.bf16.msra.mxu0 0
      %1675 = vmatprep.subr.bf16.mxu0 0
      %1676 = vmatpush1.bf16.msra.mxu0 0
      %1677 = vmatprep.subr.bf16.mxu0 0
      %1678 = vmatpush1.bf16.msra.mxu0 0
      %1679 = vmatprep.subr.bf16.mxu0 0
      %1680 = vmatpush1.bf16.msra.mxu0 0
      %1681 = vmatprep.subr.bf16.mxu0 0
      %1682 = vmatpush1.bf16.msra.mxu0 0
      %1683 = vmatprep.subr.bf16.mxu0 0
      %1684 = vmatpush1.bf16.msra.mxu0 0
      %1685 = vmatprep.subr.bf16.mxu0 0
      %1686 = vmatpush1.bf16.msra.mxu0 0
      %1687 = vmatprep.mubr.bf16.mxu0 0
      %1688 = vmatmul.mubr.bf16.gmra.mrb[0].mxu0 %v1603
      %v1689 = vpop.f32.mrb[0].mxu0
      %v1690 = vadd.f32 0.0, %v1689
      %v1691 = vpop.f32.mrb[0].mxu0
      %v1692 = vpop.f32.mrb[0].mxu0
      %v1693 = vpop.f32.mrb[0].mxu0
      %1694 = vdwg.mxu0
      %v1695 = vadd.f32 %v1325, %v1649
      %v1696 = vadd.f32 %v1326, %v1651
      %v1697 = vadd.f32 %v1327, %v1690
      %v1698 = vld [vmem:[%s164] sm:$0xff]
      %v1700 = vcombine.high %v1698, %v1698
      %v1702 = vunpack.c.l.s4 1983009808
      %v1703 = vunpack.c.0.s8 %v1702
      %v1704 = vlaneseq
      %v1705 = vshrl.u32 %v1704, 7
      %v1706 = vsub.s32 %v1703, %v1705
      %v1707 = vrot.slane %v1698, %v1706
      %v1709 = vunpack.c.l.s4 1983009808
      %v1710 = vunpack.c.0.s8 %v1709
      %v1711 = vlaneseq
      %v1712 = vshrl.u32 %v1711, 7
      %v1713 = vsub.s32 %v1710, %v1712
      %v1714 = vrot.slane %v1700, %v1713
      %v1715 = vcombine.high %v1707, %v1707
      %v1716 = vcombine.high %v1714, %v1714
      %v1722 = vshrl.u32 %v1707, 16
      %v1724 = vrot.slane %v1722, 6
      %v1725 = vshll.u32 %v1707, 16
      %v1727 = vrot.slane %v1725, 7
      %v1728 = vor.u32 %v1724, %v1727
      %v1730 = vshrl.u32 %v1715, 16
      %v1732 = vrot.slane %v1730, 6
      %v1733 = vshll.u32 %v1715, 16
      %v1735 = vrot.slane %v1733, 7
      %v1736 = vor.u32 %v1732, %v1735
      %v1738 = vshrl.u32 %v1714, 16
      %v1740 = vrot.slane %v1738, 6
      %v1741 = vshll.u32 %v1714, 16
      %v1743 = vrot.slane %v1741, 7
      %v1744 = vor.u32 %v1740, %v1743
      %v1746 = vshrl.u32 %v1716, 16
      %v1748 = vrot.slane %v1746, 6
      %v1749 = vshll.u32 %v1716, 16
      %v1751 = vrot.slane %v1749, 7
      %v1752 = vor.u32 %v1748, %v1751
      %1753 = vrot.lane.b32.xlu0 %v1728, 127
      %v1754 = vpop.permute.xlu0 %1753
      %1755 = vrot.lane.b32.xlu0 %v1736, 127
      %v1756 = vpop.permute.xlu0 %1755
      %1757 = vrot.lane.b32.xlu0 %v1744, 127
      %v1758 = vpop.permute.xlu0 %1757
      %1759 = vrot.lane.b32.xlu0 %v1752, 127
      %v1760 = vpop.permute.xlu0 %1759
      %v1761 = vsel %vm222, %v1754, %v1756
      %v1762 = vsel %vm222, %v1756, %v1758
      %v1763 = vsel %vm222, %v1758, %v1760
      %v1768 = vrot.slane %v1707, 5
      %v1769 = vrot.slane %v1715, 5
      %v1770 = vrot.slane %v1714, 5
      %v1771 = vrot.slane %v1716, 5
      %1772 = vrot.lane.b32.xlu0 %v1768, 126
      %v1773 = vpop.permute.xlu0 %1772
      %1774 = vrot.lane.b32.xlu0 %v1769, 126
      %v1775 = vpop.permute.xlu0 %1774
      %1776 = vrot.lane.b32.xlu0 %v1770, 126
      %v1777 = vpop.permute.xlu0 %1776
      %1778 = vrot.lane.b32.xlu0 %v1771, 126
      %v1779 = vpop.permute.xlu0 %1778
      %v1780 = vsel %vm237, %v1773, %v1775
      %v1781 = vsel %vm237, %v1775, %v1777
      %v1782 = vsel %vm237, %v1777, %v1779
      %v1783 = vrot.slane %v1722, 3
      %v1784 = vrot.slane %v1725, 4
      %v1785 = vor.u32 %v1783, %v1784
      %v1786 = vrot.slane %v1730, 3
      %v1787 = vrot.slane %v1733, 4
      %v1788 = vor.u32 %v1786, %v1787
      %v1789 = vrot.slane %v1738, 3
      %v1790 = vrot.slane %v1741, 4
      %v1791 = vor.u32 %v1789, %v1790
      %v1792 = vrot.slane %v1746, 3
      %v1793 = vrot.slane %v1749, 4
      %v1794 = vor.u32 %v1792, %v1793
      %1795 = vrot.lane.b32.xlu0 %v1785, 125
      %v1796 = vpop.permute.xlu0 %1795
      %1797 = vrot.lane.b32.xlu0 %v1788, 125
      %v1798 = vpop.permute.xlu0 %1797
      %1799 = vrot.lane.b32.xlu0 %v1791, 125
      %v1800 = vpop.permute.xlu0 %1799
      %1801 = vrot.lane.b32.xlu0 %v1794, 125
      %v1802 = vpop.permute.xlu0 %1801
      %v1803 = vsel %vm255, %v1796, %v1798
      %v1804 = vsel %vm255, %v1798, %v1800
      %v1805 = vsel %vm255, %v1800, %v1802
      %v1810 = vcombine.low %v1698, %v1698
      %v1812 = vunpack.c.l.s4 1983009808
      %v1813 = vunpack.c.0.s8 %v1812
      %v1814 = vlaneseq
      %v1815 = vshrl.u32 %v1814, 7
      %v1816 = vsub.s32 %v1813, %v1815
      %v1817 = vrot.slane %v1810, %v1816
      %v1818 = vcombine.low %v1817, %v1817
      %v1819 = vcombine.low %v1707, %v1707
      %1820 = vrot.lane.b32.xlu0 %v1818, 124
      %v1821 = vpop.permute.xlu0 %1820
      %1822 = vrot.lane.b32.xlu0 %v1817, 124
      %v1823 = vpop.permute.xlu0 %1822
      %1824 = vrot.lane.b32.xlu0 %v1819, 124
      %v1825 = vpop.permute.xlu0 %1824
      %1826 = vrot.lane.b32.xlu0 %v1707, 124
      %v1827 = vpop.permute.xlu0 %1826
      %v1828 = vsel %vm277, %v1821, %v1823
      %v1829 = vsel %vm277, %v1823, %v1825
      %v1830 = vsel %vm277, %v1825, %v1827
      %v1831 = vrot.slane %v1725, 1
      %v1832 = vrot.slane %v1733, 1
      %v1833 = vrot.slane %v1741, 1
      %v1834 = vrot.slane %v1749, 1
      %v1835 = vor.u32 %v1722, %v1831
      %v1836 = vor.u32 %v1730, %v1832
      %v1837 = vor.u32 %v1738, %v1833
      %v1838 = vor.u32 %v1746, %v1834
      %1839 = vrot.lane.b32.xlu0 %v1831, 123
      %v1840 = vpop.permute.xlu0 %1839
      %1841 = vrot.lane.b32.xlu0 %v1832, 123
      %v1842 = vpop.permute.xlu0 %1841
      %1843 = vrot.lane.b32.xlu0 %v1833, 123
      %v1844 = vpop.permute.xlu0 %1843
      %1845 = vrot.lane.b32.xlu0 %v1834, 123
      %v1846 = vpop.permute.xlu0 %1845
      %1847 = vrot.lane.b32.xlu0 %v1835, 123
      %v1848 = vpop.permute.xlu0 %1847
      %1849 = vrot.lane.b32.xlu0 %v1836, 123
      %v1850 = vpop.permute.xlu0 %1849
      %1851 = vrot.lane.b32.xlu0 %v1837, 123
      %v1852 = vpop.permute.xlu0 %1851
      %1853 = vrot.lane.b32.xlu0 %v1838, 123
      %v1854 = vpop.permute.xlu0 %1853
      %v1855 = vsel %vm298, %v1840, %v1842
      %v1856 = vsel %vm298, %v1842, %v1844
      %v1857 = vsel %vm298, %v1844, %v1846
      %v1858 = vsel %vm298, %v1848, %v1850
      %v1859 = vsel %vm298, %v1850, %v1852
      %v1860 = vsel %vm298, %v1852, %v1854
      %v1865 = vrot.slane %v1707, 7
      %v1866 = vrot.slane %v1715, 7
      %v1867 = vrot.slane %v1714, 7
      %v1868 = vrot.slane %v1716, 7
      %1869 = vrot.lane.b32.xlu0 %v1865, 122
      %v1870 = vpop.permute.xlu0 %1869
      %1871 = vrot.lane.b32.xlu0 %v1866, 122
      %v1872 = vpop.permute.xlu0 %1871
      %1873 = vrot.lane.b32.xlu0 %v1867, 122
      %v1874 = vpop.permute.xlu0 %1873
      %1875 = vrot.lane.b32.xlu0 %v1868, 122
      %v1876 = vpop.permute.xlu0 %1875
      %v1877 = vsel %vm315, %v1870, %v1872
      %v1878 = vsel %vm315, %v1872, %v1874
      %v1879 = vsel %vm315, %v1874, %v1876
      %v1880 = vsel %vm320, %v1707, %v1761
      %v1881 = vsel %vm320, %v1715, %v1762
      %v1882 = vsel %vm320, %v1714, %v1763
      %v1883 = vsel %vm320, %v1716, %v1760
      %v1886 = vsel %vm324, %v1880, %v1780
      %v1890 = vsel %vm324, %v1881, %v1781
      %v1894 = vsel %vm324, %v1882, %v1782
      %v1898 = vsel %vm324, %v1883, %v1779
      %v1900 = vsel %vm339, %v1886, %v1803
      %v1901 = vsel %vm339, %v1890, %v1804
      %v1902 = vsel %vm339, %v1894, %v1805
      %v1903 = vsel %vm339, %v1898, %v1802
      %v1906 = vsel %vm343, %v1900, %v1828
      %v1910 = vsel %vm343, %v1901, %v1829
      %v1914 = vsel %vm343, %v1902, %v1830
      %v1918 = vsel %vm343, %v1903, %v1827
      %v1920 = vsel %vm358, %v1906, %v1855
      %v1921 = vsel %vm358, %v1910, %v1856
      %v1922 = vsel %vm358, %v1914, %v1857
      %v1923 = vsel %vm358, %v1918, %v1846
      %v1926 = vsel %vm362, %v1858, %v1877
      %v1929 = vsel %vm362, %v1859, %v1878
      %v1932 = vsel %vm362, %v1860, %v1879
      %v1935 = vsel %vm362, %v1854, %v1876
      %s1936 = scalar_lea.vmem %s1, 20
      %v1937 = vld [vmem:[%s1936] sm:$0xf]
      %1946 = vrot.lane.b32.xlu0 %v1920, 18
      %v1947 = vpop.permute.xlu0 %1946
      %1948 = vrot.lane.b32.xlu0 %v1921, 18
      %v1949 = vpop.permute.xlu0 %1948
      %1950 = vrot.lane.b32.xlu0 %v1922, 18
      %v1951 = vpop.permute.xlu0 %1950
      %1952 = vrot.lane.b32.xlu0 %v1923, 18
      %v1953 = vpop.permute.xlu0 %1952
      %1954 = vrot.lane.b32.xlu0 %v1926, 18
      %v1955 = vpop.permute.xlu0 %1954
      %1956 = vrot.lane.b32.xlu0 %v1929, 18
      %v1957 = vpop.permute.xlu0 %1956
      %1958 = vrot.lane.b32.xlu0 %v1932, 18
      %v1959 = vpop.permute.xlu0 %1958
      %1960 = vrot.lane.b32.xlu0 %v1935, 18
      %v1961 = vpop.permute.xlu0 %1960
      %vm1962 = vcmask 146432
      %v1963 = vsel %vm1962, %v1947, %v1949
      %v1964 = vsel %vm1962, %v1949, %v1951
      %v1965 = vsel %vm1962, %v1951, %v1953
      %v1966 = vsel %vm1962, %v1955, %v1957
      %v1967 = vsel %vm1962, %v1957, %v1959
      %v1968 = vsel %vm1962, %v1959, %v1961
      %v1973 = vsel %vm401, %v1937, 0
      %v1976 = vand.u32 %v1966, %v407
      %v1979 = vand.u32 %v1967, %v407
      %v1982 = vand.u32 %v1968, %v407
      %1984 = vmatprep.subr.bf16.mxu0 %v1964
      %1985 = vmatpush1.bf16.msra.mxu0 %v1963
      %1986 = vmatprep.subr.bf16.mxu0 %v1979
      %1987 = vmatpush1.bf16.msra.mxu0 %v1976
      %1988 = vmatprep.subr.bf16.mxu0 0
      %1989 = vmatpush1.bf16.msra.mxu0 0
      %1990 = vmatprep.subr.bf16.mxu0 0
      %1991 = vmatpush1.bf16.msra.mxu0 0
      %1992 = vmatprep.subr.bf16.mxu0 0
      %1993 = vmatpush1.bf16.msra.mxu0 0
      %1994 = vmatprep.subr.bf16.mxu0 0
      %1995 = vmatpush1.bf16.msra.mxu0 0
      %1996 = vmatprep.subr.bf16.mxu0 0
      %1997 = vmatpush1.bf16.msra.mxu0 0
      %1998 = vmatprep.subr.bf16.mxu0 0
      %1999 = vmatpush1.bf16.msra.mxu0 0
      %2000 = vmatprep.subr.bf16.mxu0 0
      %2001 = vmatpush1.bf16.msra.mxu0 0
      %2002 = vmatprep.subr.bf16.mxu0 0
      %2003 = vmatpush1.bf16.msra.mxu0 0
      %2004 = vmatprep.subr.bf16.mxu0 0
      %2005 = vmatpush1.bf16.msra.mxu0 0
      %2006 = vmatprep.subr.bf16.mxu0 0
      %2007 = vmatpush1.bf16.msra.mxu0 0
      %2008 = vmatprep.subr.bf16.mxu0 0
      %2009 = vmatpush1.bf16.msra.mxu0 0
      %2010 = vmatprep.subr.bf16.mxu0 0
      %2011 = vmatpush1.bf16.msra.mxu0 0
      %2012 = vmatprep.subr.bf16.mxu0 0
      %2013 = vmatpush1.bf16.msra.mxu0 0
      %2014 = vmatprep.subr.bf16.mxu0 0
      %2015 = vmatpush1.bf16.msra.mxu0 0
      %2016 = vmatprep.mubr.bf16.mxu0 0
      %2017 = vmatmul.mubr.bf16.gmra.mrb[0].mxu0 %v1973
      %v2018 = vpop.f32.mrb[0].mxu0
      %v2019 = vadd.f32 0.0, %v2018
      %v2020 = vpop.f32.mrb[0].mxu0
      %v2021 = vadd.f32 0.0, %v2020
      %v2022 = vpop.f32.mrb[0].mxu0
      %v2023 = vpop.f32.mrb[0].mxu0
      %2024 = vdwg.mxu0
      %2025 = vmatprep.subr.bf16.mxu0 0
      %2026 = vmatpush1.bf16.msra.mxu0 %v1965
      %2027 = vmatprep.subr.bf16.mxu0 0
      %2028 = vmatpush1.bf16.msra.mxu0 %v1982
      %2029 = vmatprep.subr.bf16.mxu0 0
      %2030 = vmatpush1.bf16.msra.mxu0 0
      %2031 = vmatprep.subr.bf16.mxu0 0
      %2032 = vmatpush1.bf16.msra.mxu0 0
      %2033 = vmatprep.subr.bf16.mxu0 0
      %2034 = vmatpush1.bf16.msra.mxu0 0
      %2035 = vmatprep.subr.bf16.mxu0 0
      %2036 = vmatpush1.bf16.msra.mxu0 0
      %2037 = vmatprep.subr.bf16.mxu0 0
      %2038 = vmatpush1.bf16.msra.mxu0 0
      %2039 = vmatprep.subr.bf16.mxu0 0
      %2040 = vmatpush1.bf16.msra.mxu0 0
      %2041 = vmatprep.subr.bf16.mxu0 0
      %2042 = vmatpush1.bf16.msra.mxu0 0
      %2043 = vmatprep.subr.bf16.mxu0 0
      %2044 = vmatpush1.bf16.msra.mxu0 0
      %2045 = vmatprep.subr.bf16.mxu0 0
      %2046 = vmatpush1.bf16.msra.mxu0 0
      %2047 = vmatprep.subr.bf16.mxu0 0
      %2048 = vmatpush1.bf16.msra.mxu0 0
      %2049 = vmatprep.subr.bf16.mxu0 0
      %2050 = vmatpush1.bf16.msra.mxu0 0
      %2051 = vmatprep.subr.bf16.mxu0 0
      %2052 = vmatpush1.bf16.msra.mxu0 0
      %2053 = vmatprep.subr.bf16.mxu0 0
      %2054 = vmatpush1.bf16.msra.mxu0 0
      %2055 = vmatprep.subr.bf16.mxu0 0
      %2056 = vmatpush1.bf16.msra.mxu0 0
      %2057 = vmatprep.mubr.bf16.mxu0 0
      %2058 = vmatmul.mubr.bf16.gmra.mrb[0].mxu0 %v1973
      %v2059 = vpop.f32.mrb[0].mxu0
      %v2060 = vadd.f32 0.0, %v2059
      %v2061 = vpop.f32.mrb[0].mxu0
      %v2062 = vpop.f32.mrb[0].mxu0
      %v2063 = vpop.f32.mrb[0].mxu0
      %2064 = vdwg.mxu0
      %v2065 = vadd.f32 %v1695, %v2019
      %v2066 = vadd.f32 %v1696, %v2021
      %v2067 = vadd.f32 %v1697, %v2060
      %v2068 = vld [vmem:[%s164 + $0x2] sm:$0x3f]
      %v2070 = vcombine.high %v2068, %v2068
      %v2072 = vunpack.c.l.s4 1983009808
      %v2073 = vunpack.c.0.s8 %v2072
      %v2074 = vlaneseq
      %v2075 = vshrl.u32 %v2074, 7
      %v2076 = vsub.s32 %v2073, %v2075
      %v2077 = vrot.slane %v2068, %v2076
      %v2079 = vunpack.c.l.s4 1983009808
      %v2080 = vunpack.c.0.s8 %v2079
      %v2081 = vlaneseq
      %v2082 = vshrl.u32 %v2081, 7
      %v2083 = vsub.s32 %v2080, %v2082
      %v2084 = vrot.slane %v2070, %v2083
      %v2085 = vcombine.high %v2077, %v2077
      %v2090 = vshrl.u32 %v2077, 16
      %v2092 = vrot.slane %v2090, 6
      %v2093 = vshll.u32 %v2077, 16
      %v2095 = vrot.slane %v2093, 7
      %v2096 = vor.u32 %v2092, %v2095
      %v2098 = vshrl.u32 %v2085, 16
      %v2100 = vrot.slane %v2098, 6
      %v2101 = vshll.u32 %v2085, 16
      %v2103 = vrot.slane %v2101, 7
      %v2104 = vor.u32 %v2100, %v2103
      %v2106 = vshrl.u32 %v2084, 16
      %v2108 = vrot.slane %v2106, 6
      %v2109 = vshll.u32 %v2084, 16
      %v2111 = vrot.slane %v2109, 7
      %v2112 = vor.u32 %v2108, %v2111
      %2113 = vrot.lane.b32.xlu0 %v2096, 127
      %v2114 = vpop.permute.xlu0 %2113
      %2115 = vrot.lane.b32.xlu0 %v2104, 127
      %v2116 = vpop.permute.xlu0 %2115
      %2117 = vrot.lane.b32.xlu0 %v2112, 127
      %v2118 = vpop.permute.xlu0 %2117
      %v2119 = vsel %vm222, %v2114, %v2116
      %v2120 = vsel %vm222, %v2116, %v2118
      %v2124 = vrot.slane %v2077, 5
      %v2125 = vrot.slane %v2085, 5
      %v2126 = vrot.slane %v2084, 5
      %2127 = vrot.lane.b32.xlu0 %v2124, 126
      %v2128 = vpop.permute.xlu0 %2127
      %2129 = vrot.lane.b32.xlu0 %v2125, 126
      %v2130 = vpop.permute.xlu0 %2129
      %2131 = vrot.lane.b32.xlu0 %v2126, 126
      %v2132 = vpop.permute.xlu0 %2131
      %v2133 = vsel %vm237, %v2128, %v2130
      %v2134 = vsel %vm237, %v2130, %v2132
      %v2135 = vrot.slane %v2090, 3
      %v2136 = vrot.slane %v2093, 4
      %v2137 = vor.u32 %v2135, %v2136
      %v2138 = vrot.slane %v2098, 3
      %v2139 = vrot.slane %v2101, 4
      %v2140 = vor.u32 %v2138, %v2139
      %v2141 = vrot.slane %v2106, 3
      %v2142 = vrot.slane %v2109, 4
      %v2143 = vor.u32 %v2141, %v2142
      %2144 = vrot.lane.b32.xlu0 %v2137, 125
      %v2145 = vpop.permute.xlu0 %2144
      %2146 = vrot.lane.b32.xlu0 %v2140, 125
      %v2147 = vpop.permute.xlu0 %2146
      %2148 = vrot.lane.b32.xlu0 %v2143, 125
      %v2149 = vpop.permute.xlu0 %2148
      %v2150 = vsel %vm255, %v2145, %v2147
      %v2151 = vsel %vm255, %v2147, %v2149
      %v2155 = vcombine.low %v2068, %v2068
      %v2157 = vunpack.c.l.s4 1983009808
      %v2158 = vunpack.c.0.s8 %v2157
      %v2159 = vlaneseq
      %v2160 = vshrl.u32 %v2159, 7
      %v2161 = vsub.s32 %v2158, %v2160
      %v2162 = vrot.slane %v2155, %v2161
      %v2163 = vcombine.low %v2162, %v2162
      %v2164 = vcombine.low %v2077, %v2077
      %2165 = vrot.lane.b32.xlu0 %v2163, 124
      %v2166 = vpop.permute.xlu0 %2165
      %2167 = vrot.lane.b32.xlu0 %v2162, 124
      %v2168 = vpop.permute.xlu0 %2167
      %2169 = vrot.lane.b32.xlu0 %v2164, 124
      %v2170 = vpop.permute.xlu0 %2169
      %v2171 = vsel %vm277, %v2166, %v2168
      %v2172 = vsel %vm277, %v2168, %v2170
      %v2173 = vrot.slane %v2093, 1
      %v2174 = vrot.slane %v2101, 1
      %v2175 = vrot.slane %v2109, 1
      %v2176 = vor.u32 %v2090, %v2173
      %v2177 = vor.u32 %v2098, %v2174
      %v2178 = vor.u32 %v2106, %v2175
      %2179 = vrot.lane.b32.xlu0 %v2173, 123
      %v2180 = vpop.permute.xlu0 %2179
      %2181 = vrot.lane.b32.xlu0 %v2174, 123
      %v2182 = vpop.permute.xlu0 %2181
      %2183 = vrot.lane.b32.xlu0 %v2175, 123
      %v2184 = vpop.permute.xlu0 %2183
      %2185 = vrot.lane.b32.xlu0 %v2176, 123
      %v2186 = vpop.permute.xlu0 %2185
      %2187 = vrot.lane.b32.xlu0 %v2177, 123
      %v2188 = vpop.permute.xlu0 %2187
      %2189 = vrot.lane.b32.xlu0 %v2178, 123
      %v2190 = vpop.permute.xlu0 %2189
      %v2191 = vsel %vm298, %v2180, %v2182
      %v2192 = vsel %vm298, %v2182, %v2184
      %v2193 = vsel %vm298, %v2186, %v2188
      %v2194 = vsel %vm298, %v2188, %v2190
      %v2198 = vrot.slane %v2077, 7
      %v2199 = vrot.slane %v2085, 7
      %v2200 = vrot.slane %v2084, 7
      %2201 = vrot.lane.b32.xlu0 %v2198, 122
      %v2202 = vpop.permute.xlu0 %2201
      %2203 = vrot.lane.b32.xlu0 %v2199, 122
      %v2204 = vpop.permute.xlu0 %2203
      %2205 = vrot.lane.b32.xlu0 %v2200, 122
      %v2206 = vpop.permute.xlu0 %2205
      %v2207 = vsel %vm315, %v2202, %v2204
      %v2208 = vsel %vm315, %v2204, %v2206
      %v2209 = vsel %vm320, %v2077, %v2119
      %v2210 = vsel %vm320, %v2085, %v2120
      %v2211 = vsel %vm320, %v2084, %v2118
      %v2214 = vsel %vm324, %v2209, %v2133
      %v2218 = vsel %vm324, %v2210, %v2134
      %v2222 = vsel %vm324, %v2211, %v2132
      %v2224 = vsel %vm339, %v2214, %v2150
      %v2225 = vsel %vm339, %v2218, %v2151
      %v2226 = vsel %vm339, %v2222, %v2149
      %v2229 = vsel %vm343, %v2224, %v2171
      %v2233 = vsel %vm343, %v2225, %v2172
      %v2237 = vsel %vm343, %v2226, %v2170
      %v2239 = vsel %vm358, %v2229, %v2191
      %v2240 = vsel %vm358, %v2233, %v2192
      %v2241 = vsel %vm358, %v2237, %v2184
      %v2244 = vsel %vm362, %v2193, %v2207
      %v2247 = vsel %vm362, %v2194, %v2208
      %v2250 = vsel %vm362, %v2190, %v2206
      %s2251 = scalar_lea.vmem %s1, 24
      %v2252 = vld [vmem:[%s2251] sm:$0xf]
      %2259 = vrot.lane.b32.xlu0 %v2239, 124
      %v2260 = vpop.permute.xlu0 %2259
      %2261 = vrot.lane.b32.xlu0 %v2240, 124
      %v2262 = vpop.permute.xlu0 %2261
      %2263 = vrot.lane.b32.xlu0 %v2241, 124
      %v2264 = vpop.permute.xlu0 %2263
      %2265 = vrot.lane.b32.xlu0 %v2244, 124
      %v2266 = vpop.permute.xlu0 %2265
      %2267 = vrot.lane.b32.xlu0 %v2247, 124
      %v2268 = vpop.permute.xlu0 %2267
      %2269 = vrot.lane.b32.xlu0 %v2250, 124
      %v2270 = vpop.permute.xlu0 %2269
      %v2271 = vsel %vm277, %v2260, %v2262
      %v2272 = vsel %vm277, %v2262, %v2264
      %v2273 = vsel %vm277, %v2266, %v2268
      %v2274 = vsel %vm277, %v2268, %v2270
      %v2279 = vsel %vm401, %v2252, 0
      %v2282 = vand.u32 %v2273, %v407
      %v2285 = vand.u32 %v2274, %v407
      %v2288 = vand.u32 %v2270, %v407
      %2290 = vmatprep.subr.bf16.mxu0 %v2272
      %2291 = vmatpush1.bf16.msra.mxu0 %v2271
      %2292 = vmatprep.subr.bf16.mxu0 %v2285
      %2293 = vmatpush1.bf16.msra.mxu0 %v2282
      %2294 = vmatprep.subr.bf16.mxu0 0
      %2295 = vmatpush1.bf16.msra.mxu0 0
      %2296 = vmatprep.subr.bf16.mxu0 0
      %2297 = vmatpush1.bf16.msra.mxu0 0
      %2298 = vmatprep.subr.bf16.mxu0 0
      %2299 = vmatpush1.bf16.msra.mxu0 0
      %2300 = vmatprep.subr.bf16.mxu0 0
      %2301 = vmatpush1.bf16.msra.mxu0 0
      %2302 = vmatprep.subr.bf16.mxu0 0
      %2303 = vmatpush1.bf16.msra.mxu0 0
      %2304 = vmatprep.subr.bf16.mxu0 0
      %2305 = vmatpush1.bf16.msra.mxu0 0
      %2306 = vmatprep.subr.bf16.mxu0 0
      %2307 = vmatpush1.bf16.msra.mxu0 0
      %2308 = vmatprep.subr.bf16.mxu0 0
      %2309 = vmatpush1.bf16.msra.mxu0 0
      %2310 = vmatprep.subr.bf16.mxu0 0
      %2311 = vmatpush1.bf16.msra.mxu0 0
      %2312 = vmatprep.subr.bf16.mxu0 0
      %2313 = vmatpush1.bf16.msra.mxu0 0
      %2314 = vmatprep.subr.bf16.mxu0 0
      %2315 = vmatpush1.bf16.msra.mxu0 0
      %2316 = vmatprep.subr.bf16.mxu0 0
      %2317 = vmatpush1.bf16.msra.mxu0 0
      %2318 = vmatprep.subr.bf16.mxu0 0
      %2319 = vmatpush1.bf16.msra.mxu0 0
      %2320 = vmatprep.subr.bf16.mxu0 0
      %2321 = vmatpush1.bf16.msra.mxu0 0
      %2322 = vmatprep.mubr.bf16.mxu0 0
      %2323 = vmatmul.mubr.bf16.gmra.mrb[0].mxu0 %v2279
      %v2324 = vpop.f32.mrb[0].mxu0
      %v2325 = vadd.f32 0.0, %v2324
      %v2326 = vpop.f32.mrb[0].mxu0
      %v2327 = vadd.f32 0.0, %v2326
      %v2328 = vpop.f32.mrb[0].mxu0
      %v2329 = vpop.f32.mrb[0].mxu0
      %2330 = vdwg.mxu0
      %2331 = vmatprep.subr.bf16.mxu0 0
      %2332 = vmatpush1.bf16.msra.mxu0 %v2264
      %2333 = vmatprep.subr.bf16.mxu0 0
      %2334 = vmatpush1.bf16.msra.mxu0 %v2288
      %2335 = vmatprep.subr.bf16.mxu0 0
      %2336 = vmatpush1.bf16.msra.mxu0 0
      %2337 = vmatprep.subr.bf16.mxu0 0
      %2338 = vmatpush1.bf16.msra.mxu0 0
      %2339 = vmatprep.subr.bf16.mxu0 0
      %2340 = vmatpush1.bf16.msra.mxu0 0
      %2341 = vmatprep.subr.bf16.mxu0 0
      %2342 = vmatpush1.bf16.msra.mxu0 0
      %2343 = vmatprep.subr.bf16.mxu0 0
      %2344 = vmatpush1.bf16.msra.mxu0 0
      %2345 = vmatprep.subr.bf16.mxu0 0
      %2346 = vmatpush1.bf16.msra.mxu0 0
      %2347 = vmatprep.subr.bf16.mxu0 0
      %2348 = vmatpush1.bf16.msra.mxu0 0
      %2349 = vmatprep.subr.bf16.mxu0 0
      %2350 = vmatpush1.bf16.msra.mxu0 0
      %2351 = vmatprep.subr.bf16.mxu0 0
      %2352 = vmatpush1.bf16.msra.mxu0 0
      %2353 = vmatprep.subr.bf16.mxu0 0
      %2354 = vmatpush1.bf16.msra.mxu0 0
      %2355 = vmatprep.subr.bf16.mxu0 0
      %2356 = vmatpush1.bf16.msra.mxu0 0
      %2357 = vmatprep.subr.bf16.mxu0 0
      %2358 = vmatpush1.bf16.msra.mxu0 0
      %2359 = vmatprep.subr.bf16.mxu0 0
      %2360 = vmatpush1.bf16.msra.mxu0 0
      %2361 = vmatprep.subr.bf16.mxu0 0
      %2362 = vmatpush1.bf16.msra.mxu0 0
      %2363 = vmatprep.mubr.bf16.mxu0 0
      %2364 = vmatmul.mubr.bf16.gmra.mrb[0].mxu0 %v2279
      %v2365 = vpop.f32.mrb[0].mxu0
      %v2366 = vadd.f32 0.0, %v2365
      %v2367 = vpop.f32.mrb[0].mxu0
      %v2368 = vpop.f32.mrb[0].mxu0
      %v2369 = vpop.f32.mrb[0].mxu0
      %2370 = vdwg.mxu0
      %v2371 = vadd.f32 %v2065, %v2325
      %v2372 = vadd.f32 %v2066, %v2327
      %v2373 = vadd.f32 %v2067, %v2366
      %v2375 = vlaneseq
      %v2376 = vshrl.u32 %v2375, 7
      %v2377 = vsub.s32 0, %v2376
      %v2378 = vrot.slane %v170, %v2377
      %v2379 = vlaneseq
      %v2380 = vshrl.u32 %v2379, 7
      %v2381 = vsub.s32 1, %v2380
      %v2382 = vrot.slane %v170, %v2381
      %v2383 = vlaneseq
      %v2384 = vshrl.u32 %v2383, 7
      %v2385 = vsub.s32 2, %v2384
      %v2386 = vrot.slane %v170, %v2385
      %v2390 = vmul.f32 %v2371, %v2378
      %v2391 = vmul.f32 %v2372, %v2382
      %v2392 = vmul.f32 %v2373, %v2386
      %v2393 = vadd.f32 %v2390, %v2391
      %vm2394 = vcmask 785408
      %v2395 = vsel %vm2394, %v2392, 0.0
      %v2396 = vadd.f32 %v2393, %v2395
      %2397 = vadd.xlane.f32.xlu0 %v2396
      %v2398 = vpop.xlane.xlu0 %2397
      %v2399 = vadd.f32 %v2398, 0.0
      %v2400 = vmul.f32 %v2390, %v2390
      %v2401 = vmul.f32 %v2391, %v2391
      %v2402 = vmul.f32 %v2392, %v2392
      %v2403 = vadd.f32 %v2400, %v2401
      %v2404 = vsel %vm2394, %v2402, 0.0
      %v2405 = vadd.f32 %v2403, %v2404
      %2406 = vadd.xlane.f32.xlu0 %v2405
      %v2407 = vpop.xlane.xlu0 %2406
      %v2408 = vadd.f32 %v2407, 0.0
      %vm2409 = vcmask 7168
      %v2410 = vsel %vm2409, %v2399, %v2408
      %vm2411 = vcmask 15360
      %2412 = vst.msk [vmem:[%s168] sm:$0xff] %vm2411, %v2410
      %p2413 = scmp.lt.s32.totalorder %s14, 1
      %s2414 = scalar_select %p2413, %s14, 1
      %s2415 = smul.addr %s2414, 8
      %s2416 = scalar_lea.vmem %s3, %s2415
      // Predicated region
      $region33: #{tpu_custom_call.1} parent=31 // pred_check
        %p2417 = pneg %p100
      $region34: #{tpu_custom_call.1} parent=31 // pred_check_branch
        %2419 = sbr.rel (%p2417) target = $region36
      $region35: #{tpu_custom_call.1} parent=31 // pred_region
        _
      $region36: #{tpu_custom_call.1} parent=31 // pred_fallthru
        _
    $region32: #{tpu_custom_call.1} parent=5 // pred_fallthru
      _
    %p2420 = scmp.le.s32.totalorder 2, %s9
    // Predicated region
    $region37: #{tpu_custom_call.1} parent=5 // pred_check
      %p2421 = pneg %p2420
    $region38: #{tpu_custom_call.1} parent=5 // pred_check_branch
      %2423 = sbr.rel (%p2421) target = $region40
    $region39: #{tpu_custom_call.1} parent=5 // pred_region
      %s2424 = ssub.s32 %s9, 2
      // Predicated region
      $region41: #{tpu_custom_call.1} parent=39 // pred_check
        %p2425 = pneg %p106
      $region42: #{tpu_custom_call.1} parent=39 // pred_check_branch
        %2427 = sbr.rel (%p2425) target = $region44
      $region43: #{tpu_custom_call.1} parent=39 // pred_region
        %p2428 = scmp.lt.s32.totalorder %s15, 1
        %s2429 = scalar_select %p2428, %s15, 1
        %s2430 = smul.addr %s2429, 8
        %s2431 = scalar_lea.vmem %s3, %s2430
      $region44: #{tpu_custom_call.1} parent=39 // pred_fallthru
        _
    $region40: #{tpu_custom_call.1} parent=5 // pred_fallthru
      _
  $region6: #{tpu_custom_call.1} parent=0 // loop_footer
    %s13 = sadd.s32 1, %s9
  $region7: #{tpu_custom_call.1} parent=0 // loop_footer_branch
    %8 = sbr.rel target = $region3
  $region8: #{tpu_custom_call.1} parent=0 // loop_exit
    _

</llo_original>
